<compile_context>
chip_gen: v6e
topology: v6e:2x2x1
jax: 0.10.0
libtpu: 0.0.40
codegen_flags: <defaults>
</compile_context>

<pallas_src>
import functools

import numpy as np
import jax
import jax.numpy as jnp
from jax.experimental import pallas as pl
from jax.experimental.pallas import tpu as pltpu

_MM_DTYPE = jnp.bfloat16  # matmul input dtype (accumulation is always f32)


def _round_up(x, m):
    return ((x + m - 1) // m) * m


# ---------------------------------------------------------------------------
# Pallas kernel: conv2 .. heads in one launch (conv1 runs as a tiny XLA conv)
# ---------------------------------------------------------------------------
def _nnet_fused_kernel(
    action_size,
    x1_ref, var_ref,
    wc2_ref, sc2_ref, wc3_ref, sc3_ref,
    wi1_ref, bi1_ref, wi2_ref, bi2_ref,
    wv1_ref, bv1_ref, wv2_ref, bv2_ref,
    wcx_ref, wcy_ref, bc_ref,
    wh_ref, bh_ref,
    out_ref,
):
    def dense(x_bf16, w_ref, b_ref):
        y = jnp.dot(x_bf16, w_ref[...], preferred_element_type=jnp.float32)
        return y + b_ref[...]

    def dense_relu(x_bf16, w_ref, b_ref):
        # bias + ReLU + bf16 downcast fused: next layer consumes bf16 directly.
        return jnp.maximum(dense(x_bf16, w_ref, b_ref), 0.0).astype(_MM_DTYPE)

    # Image tower (conv1 + bn1 + relu already applied in the wrapper).
    x = dense_relu(x1_ref[...], wc2_ref, sc2_ref)   # conv2+bn2+relu (folded dense)
    x = dense_relu(x, wc3_ref, sc3_ref)             # conv3+bn3+relu (folded dense)
    x = dense_relu(x, wi1_ref, bi1_ref)             # fc_img1
    x = dense_relu(x, wi2_ref, bi2_ref)             # fc_img2

    # Var tower.
    y = dense_relu(var_ref[...], wv1_ref, bv1_ref)  # fc_var1
    y = dense_relu(y, wv2_ref, bv2_ref)             # fc_var2

    # fc_combined1 over concat([x, y], axis=1) without materializing the concat.
    c = jnp.dot(x, wcx_ref[...], preferred_element_type=jnp.float32)
    c = c + jnp.dot(y, wcy_ref[...], preferred_element_type=jnp.float32)
    c = jnp.maximum(c + bc_ref[...], 0.0).astype(_MM_DTYPE)
    # dropout_combined1: identity in eval mode.

    # Fused policy + value head: one lane-dense (TILE_M, 128) matmul + store.
    heads = dense(c, wh_ref, bh_ref)                             # f32
    col = jax.lax.broadcasted_iota(jnp.int32, heads.shape, 1)
    is_pi = col < action_size
    # masked log-softmax over the real action lanes
    m = jnp.max(jnp.where(is_pi, heads, -1e30), axis=1, keepdims=True)
    e = jnp.where(is_pi, jnp.exp(heads - m), 0.0)
    lse = jnp.log(jnp.sum(e, axis=1, keepdims=True)) + m
    out_ref[...] = jnp.where(
        is_pi, heads - lse,
        jnp.where(col == action_size, jnp.tanh(heads), 0.0))


# ---------------------------------------------------------------------------
# Host-side parameter folding (done once, outside the per-call forward)
# ---------------------------------------------------------------------------
def conv_bn_to_dense(w_conv, b_conv, gamma, beta, mean, var, h_in, w_in,
                     stride=2, pad=2, eps=1e-5):
    """Fold Conv2d(k,s,p) + BatchNorm2d(eval) into (dense, shift) such that
       relu(bn(conv(x))) == relu(x.reshape(N, -1) @ dense + shift)
    with both flattenings in PyTorch NCHW .view order."""
    w_conv = np.asarray(w_conv, np.float32)
    c_out, c_in, kh, kw = w_conv.shape
    h_out = (h_in + 2 * pad - kh) // stride + 1
    w_out = (w_in + 2 * pad - kw) // stride + 1
    dense = np.zeros((c_in, h_in, w_in, c_out, h_out, w_out), np.float32)
    for ki in range(kh):
        for kj in range(kw):
            tap_t = w_conv[:, :, ki, kj].T            # (c_in, c_out)
            for ho in range(h_out):
                hi = ho * stride + ki - pad
                if hi < 0 or hi >= h_in:
                    continue                          # zero-padding tap
                for wo in range(w_out):
                    wi = wo * stride + kj - pad
                    if wi < 0 or wi >= w_in:
                        continue
                    dense[:, hi, wi, :, ho, wo] = tap_t
    dense = dense.reshape(c_in * h_in * w_in, c_out * h_out * w_out)

    inv_std = np.asarray(gamma, np.float32) / np.sqrt(np.asarray(var, np.float32) + eps)
    shift = (np.asarray(beta, np.float32)
             + (np.asarray(b_conv, np.float32) - np.asarray(mean, np.float32)) * inv_std)
    dense = dense * np.repeat(inv_std, h_out * w_out)[None, :]   # fold BN scale
    shift = np.repeat(shift, h_out * w_out)                      # per output column
    return dense, shift, h_out, w_out


def prepare_params(params, h, w, eps=1e-5):
    """Fold/reshape PyTorch-layout params for the fused forward pass."""
    def wmat(a):
        return jnp.asarray(np.asarray(a, np.float32), _MM_DTYPE)

    def brow(a):
        return jnp.asarray(np.asarray(a, np.float32).reshape(1, -1), jnp.float32)

    # conv1 stays a real (c_out, c_in, 5, 5) conv evaluated in XLA; fold the BN
    # scale into the filter and keep only a per-channel shift.
    g1, be1, m1, v1 = [np.asarray(a, np.float32) for a in params["bn1"]]
    inv1 = g1 / np.sqrt(v1 + eps)
    conv1_w = np.asarray(params["conv1_w"], np.float32) * inv1[:, None, None, None]
    conv1_shift = be1 + (np.asarray(params["conv1_b"], np.float32) - m1) * inv1

    ops = []
    hh = (h + 2 * 2 - 5) // 2 + 1                    # conv1 output spatial
    ww = (w + 2 * 2 - 5) // 2 + 1
    for i in (2, 3):                                 # conv2/conv3 folded dense
        wconv = params[f"conv{i}_w"]
        dense, shift, hh, ww = conv_bn_to_dense(
            wconv, params[f"conv{i}_b"], *params[f"bn{i}"], h_in=hh, w_in=ww)
        ops += [wmat(dense), brow(shift)]
    c_last = int(np.asarray(params["conv3_w"]).shape[0])
    assert c_last * hh * ww == int(np.asarray(params["fc_img1_w"]).shape[0])

    for name in ("fc_img1", "fc_img2", "fc_var1", "fc_var2"):
        ops += [wmat(params[f"{name}_w"]), brow(params[f"{name}_b"])]

    x_dim = int(np.asarray(params["fc_img2_w"]).shape[1])        # 256
    wc1 = np.asarray(params["fc_c1_w"], np.float32)              # (256 + 32, 256)
    ops += [wmat(wc1[:x_dim]), wmat(wc1[x_dim:]), brow(params["fc_c1_b"])]

    # Fused, lane-padded policy + value head (single 128-wide output).
    wpi = np.asarray(params["fc_c2_w"], np.float32)              # (256, A)
    wv = np.asarray(params["fc_v_w"], np.float32)                # (256, 1)
    a_size = int(wpi.shape[1])
    head_n = _round_up(a_size + 1, 128)
    wh = np.zeros((wpi.shape[0], head_n), np.float32)
    wh[:, :a_size] = wpi
    wh[:, a_size] = wv[:, 0]
    bh = np.zeros((head_n,), np.float32)
    bh[:a_size] = np.asarray(params["fc_c2_b"], np.float32)
    bh[a_size] = float(np.asarray(params["fc_v_b"], np.float32).reshape(-1)[0])
    ops += [wmat(wh), brow(bh)]

    return {
        "conv1_w": jnp.asarray(conv1_w),
        "conv1_shift": jnp.asarray(conv1_shift),
        "kernel_ops": tuple(ops),
        "action_size": a_size,
        "head_n": head_n,
    }


# ---------------------------------------------------------------------------
# Forward wrapper
# ---------------------------------------------------------------------------
def nnet_pallas_forward(prepared, board, var):
    b = board.shape[0]
    a_size = int(prepared["action_size"])
    head_n = int(prepared["head_n"])
    kernel_ops = prepared["kernel_ops"]

    # ---- conv1 + bn1 + relu as a tiny XLA conv (3 KiB weight, not ~1 MiB) ----
    x1 = jax.lax.conv_general_dilated(
        board.astype(jnp.float32), prepared["conv1_w"],
        window_strides=(2, 2), padding=((2, 2), (2, 2)),
        dimension_numbers=("NCHW", "OIHW", "NCHW"))
    x1 = jnp.maximum(x1 + prepared["conv1_shift"][None, :, None, None], 0.0)
    x1 = x1.reshape(b, -1).astype(_MM_DTYPE)        # PyTorch NCHW .view order
    varb = var.astype(_MM_DTYPE)

    # ---- batch padding & tiling (sublane-aligned; weights stay resident) ----
    # TILE_M: 256 feeds v6e/v7x's 256-wide MXU; prefer 128 on v5e (4x128^2 MXU).
    tile_m = min(256, _round_up(b, 8))
    b_pad = _round_up(b, tile_m)
    if b_pad != b:
        x1 = jnp.pad(x1, ((0, b_pad - b), (0, 0)))
        varb = jnp.pad(varb, ((0, b_pad - b), (0, 0)))
    grid = (b_pad // tile_m,)

    x1_dim, var_dim = x1.shape[1], varb.shape[1]

    def act_spec(n):
        return pl.BlockSpec((tile_m, n), lambda i: (i, 0))

    def resident_spec(shape):
        # constant block index => stays VMEM-resident, no re-DMA per grid step
        return pl.BlockSpec(shape, lambda i: (0, 0))

    in_specs = ([act_spec(x1_dim), act_spec(var_dim)]
                + [resident_spec(o.shape) for o in kernel_ops])
    out_spec = pl.BlockSpec((tile_m, head_n), lambda i: (i, 0))

    # ---- VMEM budget & cost estimate from the actual block sizes ----
    const_bytes = sum(int(np.prod(o.shape)) * o.dtype.itemsize for o in kernel_ops)
    in_block_bytes = tile_m * (x1_dim + var_dim) * 2          # bf16 activations
    out_block_bytes = tile_m * head_n * 4                     # f32 output
    vmem_limit = int(2 * (const_bytes + in_block_bytes + out_block_bytes)
                     + (8 << 20))                             # headroom for scratch

    mm_flops = 2 * b_pad * sum(int(o.shape[0]) * int(o.shape[1])
                               for o in kernel_ops
                               if o.ndim == 2 and o.shape[0] > 1)
    bytes_accessed = (const_bytes + b_pad * (x1_dim + var_dim) * 2
                      + b_pad * head_n * 4)
    cost = pl.CostEstimate(flops=int(mm_flops),
                           transcendentals=int(b_pad * (a_size + 2)),
                           bytes_accessed=int(bytes_accessed))

    out = pl.pallas_call(
        functools.partial(_nnet_fused_kernel, a_size),
        out_shape=jax.ShapeDtypeStruct((b_pad, head_n), jnp.float32),
        grid_spec=pltpu.PrefetchScalarGridSpec(
            num_scalar_prefetch=0, grid=grid,
            in_specs=in_specs, out_specs=out_spec),
        compiler_params=pltpu.CompilerParams(
            dimension_semantics=("parallel",),
            vmem_limit_bytes=vmem_limit),
        cost_estimate=cost,
    )(x1, varb, *kernel_ops)

    return out[:b, :a_size], out[:b, a_size:a_size + 1]


# ---------------------------------------------------------------------------
# Pure-JAX f32 reference of the PyTorch module (eval mode) for verification
# ---------------------------------------------------------------------------
def nnet_reference(params, board, var, eps=1e-5):
    def bn(x, stats):
        g, b, m, v = stats
        return (g[None, :, None, None] * (x - m[None, :, None, None])
                / jnp.sqrt(v[None, :, None, None] + eps) + b[None, :, None, None])

    def conv(x, w, b):
        y = jax.lax.conv_general_dilated(
            x, w, (2, 2), ((2, 2), (2, 2)),
            dimension_numbers=("NCHW", "OIHW", "NCHW"))
        return y + b[None, :, None, None]

    x = jax.nn.relu(bn(conv(board, params["conv1_w"], params["conv1_b"]), params["bn1"]))
    x = jax.nn.relu(bn(conv(x, params["conv2_w"], params["conv2_b"]), params["bn2"]))
    x = jax.nn.relu(bn(conv(x, params["conv3_w"], params["conv3_b"]), params["bn3"]))
    x = x.reshape(x.shape[0], -1)
    x = jax.nn.relu(x @ params["fc_img1_w"] + params["fc_img1_b"])
    x = jax.nn.relu(x @ params["fc_img2_w"] + params["fc_img2_b"])
    y = jax.nn.relu(var @ params["fc_var1_w"] + params["fc_var1_b"])
    y = jax.nn.relu(y @ params["fc_var2_w"] + params["fc_var2_b"])
    c = jnp.concatenate([x, y], axis=1)
    c = jax.nn.relu(c @ params["fc_c1_w"] + params["fc_c1_b"])
    pi = c @ params["fc_c2_w"] + params["fc_c2_b"]
    v = c @ params["fc_v_w"] + params["fc_v_b"]
    return jax.nn.log_softmax(pi, axis=1), jnp.tanh(v)


# ---------------------------------------------------------------------------
# Parameter initialization (PyTorch-equivalent layout; Linear stored as (in, out))
# ---------------------------------------------------------------------------
def init_params(key, board_x, num_channels, flat_dim, var_size, action_size):
    keys = iter(jax.random.split(key, 32))

    def w(shape, s=0.1):
        return s * jax.random.normal(next(keys), shape, jnp.float32)

    def bn(c):
        # (gamma, beta, running_mean, running_var)
        return (1.0 + w((c,)), w((c,)), w((c,)), 1.0 + 0.1 * jnp.abs(w((c,))))

    p = {}
    p["conv1_w"] = w((num_channels, board_x, 5, 5))
    p["conv1_b"] = w((num_channels,))
    p["bn1"] = bn(num_channels)
    p["conv2_w"] = w((num_channels, num_channels, 5, 5))
    p["conv2_b"] = w((num_channels,))
    p["bn2"] = bn(num_channels)
    p["conv3_w"] = w((num_channels, num_channels, 5, 5))
    p["conv3_b"] = w((num_channels,))
    p["bn3"] = bn(num_channels)
    p["fc_img1_w"], p["fc_img1_b"] = w((flat_dim, 512)), w((512,))
    p["fc_img2_w"], p["fc_img2_b"] = w((512, 256)), w((256,))
    p["fc_var1_w"], p["fc_var1_b"] = w((var_size, 32)), w((32,))
    p["fc_var2_w"], p["fc_var2_b"] = w((32, 32)), w((32,))
    p["fc_c1_w"], p["fc_c1_b"] = w((256 + 32, 256)), w((256,))
    p["fc_c2_w"], p["fc_c2_b"] = w((256, action_size)), w((action_size,))
    p["fc_v_w"], p["fc_v_b"] = w((256, 1)), w((1,))
    return p


if __name__ == "__main__":
    # board_size = (board_x=4 input channels, board_y=16, board_z=16), var_size=8
    B, C_IN, H, W = 2, 4, 16, 16
    NUM_CHANNELS = 8
    VAR_SIZE = 8
    ACTION_SIZE = 10

    # 3 convs (k=5, s=2, p=2): 16 -> 8 -> 4 -> 2
    final_h = final_w = 2
    flat_dim = NUM_CHANNELS * final_h * final_w

    key = jax.random.PRNGKey(0)
    k_params, k_board, k_var = jax.random.split(key, 3)
    params = init_params(k_params, C_IN, NUM_CHANNELS, flat_dim, VAR_SIZE, ACTION_SIZE)
    prepared = prepare_params(params, H, W)

    board = jax.random.normal(k_board, (B, C_IN, H, W), jnp.float32)
    var = jax.random.normal(k_var, (B, VAR_SIZE), jnp.float32)

    fwd = jax.jit(functools.partial(nnet_pallas_forward, prepared))
    log_pi, v = fwd(board, var)
    jax.block_until_ready((log_pi, v))

    assert log_pi.shape == (B, ACTION_SIZE) and v.shape == (B, 1)
    # Sanity: log_softmax rows exponentiate to 1, tanh output is bounded.
    assert np.allclose(np.exp(np.asarray(log_pi)).sum(axis=1), 1.0, atol=1e-3)
    assert np.all(np.abs(np.asarray(v)) <= 1.0 + 1e-6)

    # Numerical check vs. a pure-JAX f32 reference (loose: kernel matmuls are bf16).
    ref_lp, ref_v = nnet_reference(params, board, var)
    assert float(jnp.max(jnp.abs(log_pi - ref_lp))) < 0.25, "log_pi mismatch"
    assert float(jnp.max(jnp.abs(v - ref_v))) < 0.10, "v mismatch"

    print("KERNEL_OK")
</pallas_src>

<mosaic_0001>
module attributes {stable_mosaic.version = 11 : i64} {
  func.func @_nnet_fused_kernel(%arg0: i32, %arg1: memref<8x512xbf16, #tpu.memory_space<vmem>>, %arg2: memref<8x8xbf16, #tpu.memory_space<vmem>>, %arg3: memref<512x128xbf16, #tpu.memory_space<vmem>>, %arg4: memref<1x128xf32, #tpu.memory_space<vmem>>, %arg5: memref<128x32xbf16, #tpu.memory_space<vmem>>, %arg6: memref<1x32xf32, #tpu.memory_space<vmem>>, %arg7: memref<32x512xbf16, #tpu.memory_space<vmem>>, %arg8: memref<1x512xf32, #tpu.memory_space<vmem>>, %arg9: memref<512x256xbf16, #tpu.memory_space<vmem>>, %arg10: memref<1x256xf32, #tpu.memory_space<vmem>>, %arg11: memref<8x32xbf16, #tpu.memory_space<vmem>>, %arg12: memref<1x32xf32, #tpu.memory_space<vmem>>, %arg13: memref<32x32xbf16, #tpu.memory_space<vmem>>, %arg14: memref<1x32xf32, #tpu.memory_space<vmem>>, %arg15: memref<256x256xbf16, #tpu.memory_space<vmem>>, %arg16: memref<32x256xbf16, #tpu.memory_space<vmem>>, %arg17: memref<1x256xf32, #tpu.memory_space<vmem>>, %arg18: memref<256x128xbf16, #tpu.memory_space<vmem>>, %arg19: memref<1x128xf32, #tpu.memory_space<vmem>>, %arg20: memref<8x128xf32, #tpu.memory_space<vmem>>) attributes {dimension_semantics = [#tpu.dimension_semantics<parallel>], iteration_bounds = array<i64: 1>, scalar_prefetch = 0 : i64, scratch_operands = 0 : i64, tpu.core_type = #tpu.core_type<tc>, window_params = [{transform_indices = @transform_0, window_bounds = array<i64: 8, 512>}, {transform_indices = @transform_1, window_bounds = array<i64: 8, 8>}, {pipeline_mode = #tpu.pipeline_mode<synchronous>, transform_indices = @transform_2, window_bounds = array<i64: 512, 128>}, {pipeline_mode = #tpu.pipeline_mode<synchronous>, transform_indices = @transform_3, window_bounds = array<i64: 1, 128>}, {pipeline_mode = #tpu.pipeline_mode<synchronous>, transform_indices = @transform_4, window_bounds = array<i64: 128, 32>}, {pipeline_mode = #tpu.pipeline_mode<synchronous>, transform_indices = @transform_5, window_bounds = array<i64: 1, 32>}, {pipeline_mode = #tpu.pipeline_mode<synchronous>, transform_indices = @transform_6, window_bounds = array<i64: 32, 512>}, {pipeline_mode = #tpu.pipeline_mode<synchronous>, transform_indices = @transform_7, window_bounds = array<i64: 1, 512>}, {pipeline_mode = #tpu.pipeline_mode<synchronous>, transform_indices = @transform_8, window_bounds = array<i64: 512, 256>}, {pipeline_mode = #tpu.pipeline_mode<synchronous>, transform_indices = @transform_9, window_bounds = array<i64: 1, 256>}, {pipeline_mode = #tpu.pipeline_mode<synchronous>, transform_indices = @transform_10, window_bounds = array<i64: 8, 32>}, {pipeline_mode = #tpu.pipeline_mode<synchronous>, transform_indices = @transform_11, window_bounds = array<i64: 1, 32>}, {pipeline_mode = #tpu.pipeline_mode<synchronous>, transform_indices = @transform_12, window_bounds = array<i64: 32, 32>}, {pipeline_mode = #tpu.pipeline_mode<synchronous>, transform_indices = @transform_13, window_bounds = array<i64: 1, 32>}, {pipeline_mode = #tpu.pipeline_mode<synchronous>, transform_indices = @transform_14, window_bounds = array<i64: 256, 256>}, {pipeline_mode = #tpu.pipeline_mode<synchronous>, transform_indices = @transform_15, window_bounds = array<i64: 32, 256>}, {pipeline_mode = #tpu.pipeline_mode<synchronous>, transform_indices = @transform_16, window_bounds = array<i64: 1, 256>}, {pipeline_mode = #tpu.pipeline_mode<synchronous>, transform_indices = @transform_17, window_bounds = array<i64: 256, 128>}, {pipeline_mode = #tpu.pipeline_mode<synchronous>, transform_indices = @transform_18, window_bounds = array<i64: 1, 128>}, {transform_indices = @transform_19, window_bounds = array<i64: 8, 128>}]} {
    %c0 = arith.constant 0 : index
    %c0_0 = arith.constant 0 : index
    %0 = vector.load %arg1[%c0, %c0_0] : memref<8x512xbf16, #tpu.memory_space<vmem>>, vector<8x512xbf16>
    %c0_1 = arith.constant 0 : index
    %c0_2 = arith.constant 0 : index
    %1 = vector.load %arg3[%c0_1, %c0_2] : memref<512x128xbf16, #tpu.memory_space<vmem>>, vector<512x128xbf16>
    %cst = arith.constant dense<0.000000e+00> : vector<8x128xf32>
    %2 = tpu.matmul %0, %1, %cst {dimension_numbers = #tpu.dot_dimension_numbers<[1], [0], [0], [1], [0, 0, 1, 1], [], []>} : vector<8x512xbf16>, vector<512x128xbf16>, vector<8x128xf32> -> vector<8x128xf32>
    %c0_3 = arith.constant 0 : index
    %c0_4 = arith.constant 0 : index
    %3 = vector.load %arg4[%c0_3, %c0_4] : memref<1x128xf32, #tpu.memory_space<vmem>>, vector<1x128xf32>
    %4 = vector.broadcast %3 : vector<1x128xf32> to vector<8x128xf32>
    %5 = arith.addf %2, %4 : vector<8x128xf32>
    %cst_5 = arith.constant 0.000000e+00 : f32
    %6 = vector.broadcast %cst_5 : f32 to vector<8x128xf32>
    %7 = arith.maximumf %5, %6 : vector<8x128xf32>
    %8 = arith.truncf %7 : vector<8x128xf32> to vector<8x128xbf16>
    %c0_6 = arith.constant 0 : index
    %c0_7 = arith.constant 0 : index
    %9 = vector.load %arg5[%c0_6, %c0_7] : memref<128x32xbf16, #tpu.memory_space<vmem>>, vector<128x32xbf16>
    %cst_8 = arith.constant dense<0.000000e+00> : vector<8x32xf32>
    %10 = tpu.matmul %8, %9, %cst_8 {dimension_numbers = #tpu.dot_dimension_numbers<[1], [0], [0], [1], [0, 0, 1, 1], [], []>} : vector<8x128xbf16>, vector<128x32xbf16>, vector<8x32xf32> -> vector<8x32xf32>
    %c0_9 = arith.constant 0 : index
    %c0_10 = arith.constant 0 : index
    %11 = vector.load %arg6[%c0_9, %c0_10] : memref<1x32xf32, #tpu.memory_space<vmem>>, vector<1x32xf32>
    %12 = vector.broadcast %11 : vector<1x32xf32> to vector<8x32xf32>
    %13 = arith.addf %10, %12 : vector<8x32xf32>
    %cst_11 = arith.constant 0.000000e+00 : f32
    %14 = vector.broadcast %cst_11 : f32 to vector<8x32xf32>
    %15 = arith.maximumf %13, %14 : vector<8x32xf32>
    %16 = arith.truncf %15 : vector<8x32xf32> to vector<8x32xbf16>
    %c0_12 = arith.constant 0 : index
    %c0_13 = arith.constant 0 : index
    %17 = vector.load %arg7[%c0_12, %c0_13] : memref<32x512xbf16, #tpu.memory_space<vmem>>, vector<32x512xbf16>
    %cst_14 = arith.constant dense<0.000000e+00> : vector<8x512xf32>
    %18 = tpu.matmul %16, %17, %cst_14 {dimension_numbers = #tpu.dot_dimension_numbers<[1], [0], [0], [1], [0, 0, 1, 1], [], []>} : vector<8x32xbf16>, vector<32x512xbf16>, vector<8x512xf32> -> vector<8x512xf32>
    %c0_15 = arith.constant 0 : index
    %c0_16 = arith.constant 0 : index
    %19 = vector.load %arg8[%c0_15, %c0_16] : memref<1x512xf32, #tpu.memory_space<vmem>>, vector<1x512xf32>
    %20 = vector.broadcast %19 : vector<1x512xf32> to vector<8x512xf32>
    %21 = arith.addf %18, %20 : vector<8x512xf32>
    %cst_17 = arith.constant 0.000000e+00 : f32
    %22 = vector.broadcast %cst_17 : f32 to vector<8x512xf32>
    %23 = arith.maximumf %21, %22 : vector<8x512xf32>
    %24 = arith.truncf %23 : vector<8x512xf32> to vector<8x512xbf16>
    %c0_18 = arith.constant 0 : index
    %c0_19 = arith.constant 0 : index
    %25 = vector.load %arg9[%c0_18, %c0_19] : memref<512x256xbf16, #tpu.memory_space<vmem>>, vector<512x256xbf16>
    %cst_20 = arith.constant dense<0.000000e+00> : vector<8x256xf32>
    %26 = tpu.matmul %24, %25, %cst_20 {dimension_numbers = #tpu.dot_dimension_numbers<[1], [0], [0], [1], [0, 0, 1, 1], [], []>} : vector<8x512xbf16>, vector<512x256xbf16>, vector<8x256xf32> -> vector<8x256xf32>
    %c0_21 = arith.constant 0 : index
    %c0_22 = arith.constant 0 : index
    %27 = vector.load %arg10[%c0_21, %c0_22] : memref<1x256xf32, #tpu.memory_space<vmem>>, vector<1x256xf32>
    %28 = vector.broadcast %27 : vector<1x256xf32> to vector<8x256xf32>
    %29 = arith.addf %26, %28 : vector<8x256xf32>
    %cst_23 = arith.constant 0.000000e+00 : f32
    %30 = vector.broadcast %cst_23 : f32 to vector<8x256xf32>
    %31 = arith.maximumf %29, %30 : vector<8x256xf32>
    %32 = arith.truncf %31 : vector<8x256xf32> to vector<8x256xbf16>
    %c0_24 = arith.constant 0 : index
    %c0_25 = arith.constant 0 : index
    %33 = vector.load %arg2[%c0_24, %c0_25] : memref<8x8xbf16, #tpu.memory_space<vmem>>, vector<8x8xbf16>
    %c0_26 = arith.constant 0 : index
    %c0_27 = arith.constant 0 : index
    %34 = vector.load %arg11[%c0_26, %c0_27] : memref<8x32xbf16, #tpu.memory_space<vmem>>, vector<8x32xbf16>
    %cst_28 = arith.constant dense<0.000000e+00> : vector<8x32xf32>
    %35 = tpu.matmul %33, %34, %cst_28 {dimension_numbers = #tpu.dot_dimension_numbers<[1], [0], [0], [1], [0, 0, 1, 1], [], []>} : vector<8x8xbf16>, vector<8x32xbf16>, vector<8x32xf32> -> vector<8x32xf32>
    %c0_29 = arith.constant 0 : index
    %c0_30 = arith.constant 0 : index
    %36 = vector.load %arg12[%c0_29, %c0_30] : memref<1x32xf32, #tpu.memory_space<vmem>>, vector<1x32xf32>
    %37 = vector.broadcast %36 : vector<1x32xf32> to vector<8x32xf32>
    %38 = arith.addf %35, %37 : vector<8x32xf32>
    %cst_31 = arith.constant 0.000000e+00 : f32
    %39 = vector.broadcast %cst_31 : f32 to vector<8x32xf32>
    %40 = arith.maximumf %38, %39 : vector<8x32xf32>
    %41 = arith.truncf %40 : vector<8x32xf32> to vector<8x32xbf16>
    %c0_32 = arith.constant 0 : index
    %c0_33 = arith.constant 0 : index
    %42 = vector.load %arg13[%c0_32, %c0_33] : memref<32x32xbf16, #tpu.memory_space<vmem>>, vector<32x32xbf16>
    %cst_34 = arith.constant dense<0.000000e+00> : vector<8x32xf32>
    %43 = tpu.matmul %41, %42, %cst_34 {dimension_numbers = #tpu.dot_dimension_numbers<[1], [0], [0], [1], [0, 0, 1, 1], [], []>} : vector<8x32xbf16>, vector<32x32xbf16>, vector<8x32xf32> -> vector<8x32xf32>
    %c0_35 = arith.constant 0 : index
    %c0_36 = arith.constant 0 : index
    %44 = vector.load %arg14[%c0_35, %c0_36] : memref<1x32xf32, #tpu.memory_space<vmem>>, vector<1x32xf32>
    %45 = vector.broadcast %44 : vector<1x32xf32> to vector<8x32xf32>
    %46 = arith.addf %43, %45 : vector<8x32xf32>
    %cst_37 = arith.constant 0.000000e+00 : f32
    %47 = vector.broadcast %cst_37 : f32 to vector<8x32xf32>
    %48 = arith.maximumf %46, %47 : vector<8x32xf32>
    %49 = arith.truncf %48 : vector<8x32xf32> to vector<8x32xbf16>
    %c0_38 = arith.constant 0 : index
    %c0_39 = arith.constant 0 : index
    %50 = vector.load %arg15[%c0_38, %c0_39] : memref<256x256xbf16, #tpu.memory_space<vmem>>, vector<256x256xbf16>
    %cst_40 = arith.constant dense<0.000000e+00> : vector<8x256xf32>
    %51 = tpu.matmul %32, %50, %cst_40 {dimension_numbers = #tpu.dot_dimension_numbers<[1], [0], [0], [1], [0, 0, 1, 1], [], []>} : vector<8x256xbf16>, vector<256x256xbf16>, vector<8x256xf32> -> vector<8x256xf32>
    %c0_41 = arith.constant 0 : index
    %c0_42 = arith.constant 0 : index
    %52 = vector.load %arg16[%c0_41, %c0_42] : memref<32x256xbf16, #tpu.memory_space<vmem>>, vector<32x256xbf16>
    %cst_43 = arith.constant dense<0.000000e+00> : vector<8x256xf32>
    %53 = tpu.matmul %49, %52, %cst_43 {dimension_numbers = #tpu.dot_dimension_numbers<[1], [0], [0], [1], [0, 0, 1, 1], [], []>} : vector<8x32xbf16>, vector<32x256xbf16>, vector<8x256xf32> -> vector<8x256xf32>
    %54 = arith.addf %51, %53 : vector<8x256xf32>
    %c0_44 = arith.constant 0 : index
    %c0_45 = arith.constant 0 : index
    %55 = vector.load %arg17[%c0_44, %c0_45] : memref<1x256xf32, #tpu.memory_space<vmem>>, vector<1x256xf32>
    %56 = vector.broadcast %55 : vector<1x256xf32> to vector<8x256xf32>
    %57 = arith.addf %54, %56 : vector<8x256xf32>
    %cst_46 = arith.constant 0.000000e+00 : f32
    %58 = vector.broadcast %cst_46 : f32 to vector<8x256xf32>
    %59 = arith.maximumf %57, %58 : vector<8x256xf32>
    %60 = arith.truncf %59 : vector<8x256xf32> to vector<8x256xbf16>
    %c0_47 = arith.constant 0 : index
    %c0_48 = arith.constant 0 : index
    %61 = vector.load %arg18[%c0_47, %c0_48] : memref<256x128xbf16, #tpu.memory_space<vmem>>, vector<256x128xbf16>
    %cst_49 = arith.constant dense<0.000000e+00> : vector<8x128xf32>
    %62 = tpu.matmul %60, %61, %cst_49 {dimension_numbers = #tpu.dot_dimension_numbers<[1], [0], [0], [1], [0, 0, 1, 1], [], []>} : vector<8x256xbf16>, vector<256x128xbf16>, vector<8x128xf32> -> vector<8x128xf32>
    %c0_50 = arith.constant 0 : index
    %c0_51 = arith.constant 0 : index
    %63 = vector.load %arg19[%c0_50, %c0_51] : memref<1x128xf32, #tpu.memory_space<vmem>>, vector<1x128xf32>
    %64 = vector.broadcast %63 : vector<1x128xf32> to vector<8x128xf32>
    %65 = arith.addf %62, %64 : vector<8x128xf32>
    %66 = tpu.iota {dimensions = array<i32: 1>} : vector<8x128xi32>
    %c10_i32 = arith.constant 10 : i32
    %67 = vector.broadcast %c10_i32 : i32 to vector<8x128xi32>
    %68 = arith.cmpi slt, %66, %67 : vector<8x128xi32>
    %cst_52 = arith.constant -1.000000e+30 : f32
    %69 = vector.broadcast %cst_52 : f32 to vector<8x128xf32>
    %70 = arith.select %68, %65, %69 : vector<8x128xi1>, vector<8x128xf32>
    %cst_53 = arith.constant dense<0xFF800000> : vector<8xf32>
    %71 = vector.multi_reduction <maximumf>, %70, %cst_53 [1] : vector<8x128xf32> to vector<8xf32>
    %72 = vector.shape_cast %71 : vector<8xf32> to vector<8x1xf32>
    %73 = vector.broadcast %72 : vector<8x1xf32> to vector<8x128xf32>
    %74 = arith.subf %65, %73 : vector<8x128xf32>
    %75 = math.exp %74 : vector<8x128xf32>
    %cst_54 = arith.constant 0.000000e+00 : f32
    %76 = vector.broadcast %cst_54 : f32 to vector<8x128xf32>
    %77 = arith.select %68, %75, %76 : vector<8x128xi1>, vector<8x128xf32>
    %cst_55 = arith.constant dense<0.000000e+00> : vector<8xf32>
    %78 = vector.multi_reduction <add>, %77, %cst_55 [1] : vector<8x128xf32> to vector<8xf32>
    %79 = vector.shape_cast %78 : vector<8xf32> to vector<8x1xf32>
    %80 = math.log %79 : vector<8x1xf32>
    %81 = arith.addf %80, %72 : vector<8x1xf32>
    %82 = vector.broadcast %81 : vector<8x1xf32> to vector<8x128xf32>
    %83 = arith.subf %65, %82 : vector<8x128xf32>
    %c10_i32_56 = arith.constant 10 : i32
    %84 = vector.broadcast %c10_i32_56 : i32 to vector<8x128xi32>
    %85 = arith.cmpi eq, %66, %84 : vector<8x128xi32>
    %86 = math.tanh %65 : vector<8x128xf32>
    %cst_57 = arith.constant 0.000000e+00 : f32
    %87 = vector.broadcast %cst_57 : f32 to vector<8x128xf32>
    %88 = arith.select %85, %86, %87 : vector<8x128xi1>, vector<8x128xf32>
    %89 = arith.select %68, %83, %88 : vector<8x128xi1>, vector<8x128xf32>
    %c0_58 = arith.constant 0 : index
    %c0_59 = arith.constant 0 : index
    %90 = vector.load %arg20[%c0_58, %c0_59] : memref<8x128xf32, #tpu.memory_space<vmem>>, vector<8x128xf32>
    tpu.vector_store %arg20[%c0_58, %c0_59], %89 {strides = array<i32>} : memref<8x128xf32, #tpu.memory_space<vmem>>, vector<8x128xf32>,
    return
  }
  func.func @transform_0(%arg0: i32) -> (i32, i32) {
    %c0_i32 = arith.constant 0 : i32
    %c0_i32_0 = arith.constant 0 : i32
    return %arg0, %c0_i32 : i32, i32
  }
  func.func @transform_1(%arg0: i32) -> (i32, i32) {
    %c0_i32 = arith.constant 0 : i32
    %c0_i32_0 = arith.constant 0 : i32
    return %arg0, %c0_i32 : i32, i32
  }
  func.func @transform_2(%arg0: i32) -> (i32, i32) {
    %c0_i32 = arith.constant 0 : i32
    %c0_i32_0 = arith.constant 0 : i32
    %c0_i32_1 = arith.constant 0 : i32
    return %c0_i32, %c0_i32_0 : i32, i32
  }
  func.func @transform_3(%arg0: i32) -> (i32, i32) {
    %c0_i32 = arith.constant 0 : i32
    %c0_i32_0 = arith.constant 0 : i32
    %c0_i32_1 = arith.constant 0 : i32
    return %c0_i32, %c0_i32_0 : i32, i32
  }
  func.func @transform_4(%arg0: i32) -> (i32, i32) {
    %c0_i32 = arith.constant 0 : i32
    %c0_i32_0 = arith.constant 0 : i32
    %c0_i32_1 = arith.constant 0 : i32
    return %c0_i32, %c0_i32_0 : i32, i32
  }
  func.func @transform_5(%arg0: i32) -> (i32, i32) {
    %c0_i32 = arith.constant 0 : i32
    %c0_i32_0 = arith.constant 0 : i32
    %c0_i32_1 = arith.constant 0 : i32
    return %c0_i32, %c0_i32_0 : i32, i32
  }
  func.func @transform_6(%arg0: i32) -> (i32, i32) {
    %c0_i32 = arith.constant 0 : i32
    %c0_i32_0 = arith.constant 0 : i32
    %c0_i32_1 = arith.constant 0 : i32
    return %c0_i32, %c0_i32_0 : i32, i32
  }
  func.func @transform_7(%arg0: i32) -> (i32, i32) {
    %c0_i32 = arith.constant 0 : i32
    %c0_i32_0 = arith.constant 0 : i32
    %c0_i32_1 = arith.constant 0 : i32
    return %c0_i32, %c0_i32_0 : i32, i32
  }
  func.func @transform_8(%arg0: i32) -> (i32, i32) {
    %c0_i32 = arith.constant 0 : i32
    %c0_i32_0 = arith.constant 0 : i32
    %c0_i32_1 = arith.constant 0 : i32
    return %c0_i32, %c0_i32_0 : i32, i32
  }
  func.func @transform_9(%arg0: i32) -> (i32, i32) {
    %c0_i32 = arith.constant 0 : i32
    %c0_i32_0 = arith.constant 0 : i32
    %c0_i32_1 = arith.constant 0 : i32
    return %c0_i32, %c0_i32_0 : i32, i32
  }
  func.func @transform_10(%arg0: i32) -> (i32, i32) {
    %c0_i32 = arith.constant 0 : i32
    %c0_i32_0 = arith.constant 0 : i32
    %c0_i32_1 = arith.constant 0 : i32
    return %c0_i32, %c0_i32_0 : i32, i32
  }
  func.func @transform_11(%arg0: i32) -> (i32, i32) {
    %c0_i32 = arith.constant 0 : i32
    %c0_i32_0 = arith.constant 0 : i32
    %c0_i32_1 = arith.constant 0 : i32
    return %c0_i32, %c0_i32_0 : i32, i32
  }
  func.func @transform_12(%arg0: i32) -> (i32, i32) {
    %c0_i32 = arith.constant 0 : i32
    %c0_i32_0 = arith.constant 0 : i32
    %c0_i32_1 = arith.constant 0 : i32
    return %c0_i32, %c0_i32_0 : i32, i32
  }
  func.func @transform_13(%arg0: i32) -> (i32, i32) {
    %c0_i32 = arith.constant 0 : i32
    %c0_i32_0 = arith.constant 0 : i32
    %c0_i32_1 = arith.constant 0 : i32
    return %c0_i32, %c0_i32_0 : i32, i32
  }
  func.func @transform_14(%arg0: i32) -> (i32, i32) {
    %c0_i32 = arith.constant 0 : i32
    %c0_i32_0 = arith.constant 0 : i32
    %c0_i32_1 = arith.constant 0 : i32
    return %c0_i32, %c0_i32_0 : i32, i32
  }
  func.func @transform_15(%arg0: i32) -> (i32, i32) {
    %c0_i32 = arith.constant 0 : i32
    %c0_i32_0 = arith.constant 0 : i32
    %c0_i32_1 = arith.constant 0 : i32
    return %c0_i32, %c0_i32_0 : i32, i32
  }
  func.func @transform_16(%arg0: i32) -> (i32, i32) {
    %c0_i32 = arith.constant 0 : i32
    %c0_i32_0 = arith.constant 0 : i32
    %c0_i32_1 = arith.constant 0 : i32
    return %c0_i32, %c0_i32_0 : i32, i32
  }
  func.func @transform_17(%arg0: i32) -> (i32, i32) {
    %c0_i32 = arith.constant 0 : i32
    %c0_i32_0 = arith.constant 0 : i32
    %c0_i32_1 = arith.constant 0 : i32
    return %c0_i32, %c0_i32_0 : i32, i32
  }
  func.func @transform_18(%arg0: i32) -> (i32, i32) {
    %c0_i32 = arith.constant 0 : i32
    %c0_i32_0 = arith.constant 0 : i32
    %c0_i32_1 = arith.constant 0 : i32
    return %c0_i32, %c0_i32_0 : i32, i32
  }
  func.func @transform_19(%arg0: i32) -> (i32, i32) {
    %c0_i32 = arith.constant 0 : i32
    %c0_i32_0 = arith.constant 0 : i32
    return %arg0, %c0_i32 : i32, i32
  }
}

</mosaic_0001>

<llo_original>
// kernel: nnet_pallas_forward.1
$region0: #{nnet_pallas_forward.1}
  #allocation0 [shape = 'u32[]', space=smem, size = 0x4, offset = 0x4, fixed_abs, tag = 'smem constant byte address 0x4 - core index']
  #allocation1 [shape = 'u32[144,128]{1,0:T(1,128)}', space=vmem, size = 0x12000, scoped, tag = 'internal scratch']
  %s0 = inlined_call_operand.vmem [shape: bf16[8,512], index: 0, kind: input, shape index: {}]
  %s1 = inlined_call_operand.vmem [shape: bf16[8,8], index: 1, kind: input, shape index: {}]
  %s2 = inlined_call_operand.vmem [shape: bf16[512,128], index: 2, kind: input, shape index: {}]
  %s3 = inlined_call_operand.vmem [shape: f32[1,128], index: 3, kind: input, shape index: {}]
  %s4 = inlined_call_operand.vmem [shape: bf16[128,32], index: 4, kind: input, shape index: {}]
  %s5 = inlined_call_operand.vmem [shape: f32[1,32], index: 5, kind: input, shape index: {}]
  %s6 = inlined_call_operand.vmem [shape: bf16[32,512], index: 6, kind: input, shape index: {}]
  %s7 = inlined_call_operand.vmem [shape: f32[1,512], index: 7, kind: input, shape index: {}]
  %s8 = inlined_call_operand.vmem [shape: bf16[512,256], index: 8, kind: input, shape index: {}]
  %s9 = inlined_call_operand.vmem [shape: f32[1,256], index: 9, kind: input, shape index: {}]
  %s10 = inlined_call_operand.vmem [shape: bf16[8,32], index: 10, kind: input, shape index: {}]
  %s11 = inlined_call_operand.vmem [shape: f32[1,32], index: 11, kind: input, shape index: {}]
  %s12 = inlined_call_operand.vmem [shape: bf16[32,32], index: 12, kind: input, shape index: {}]
  %s13 = inlined_call_operand.vmem [shape: f32[1,32], index: 13, kind: input, shape index: {}]
  %s14 = inlined_call_operand.vmem [shape: bf16[256,256], index: 14, kind: input, shape index: {}]
  %s15 = inlined_call_operand.vmem [shape: bf16[32,256], index: 15, kind: input, shape index: {}]
  %s16 = inlined_call_operand.vmem [shape: f32[1,256], index: 16, kind: input, shape index: {}]
  %s17 = inlined_call_operand.vmem [shape: bf16[256,128], index: 17, kind: input, shape index: {}]
  %s18 = inlined_call_operand.vmem [shape: f32[1,128], index: 18, kind: input, shape index: {}]
  %s19 = inlined_call_operand.vmem [shape: f32[8,128], index: 19, kind: output, shape index: {}]
  %s20 = sld [smem:[#allocation0]]
  $region86: #{nnet_pallas_forward.1} parent=0
    _
  %s22 = ssub.s32 1, %s20
  %s23 = scalar_select 0, %s22, %s20
  // Predicated region
  $region2: #{nnet_pallas_forward.1} parent=0 // pred_check
    _
  $region3: #{nnet_pallas_forward.1} parent=0 // pred_check_branch
    %25 = sbr.rel (0) target = $region5
  $region4: #{nnet_pallas_forward.1} parent=0 // pred_region
    _
  $region5: #{nnet_pallas_forward.1} parent=0 // pred_fallthru
    _
  // Predicated region
  $region6: #{nnet_pallas_forward.1} parent=0 // pred_check
    _
  $region7: #{nnet_pallas_forward.1} parent=0 // pred_check_branch
    %27 = sbr.rel (0) target = $region9
  $region8: #{nnet_pallas_forward.1} parent=0 // pred_region
    _
  $region9: #{nnet_pallas_forward.1} parent=0 // pred_fallthru
    _
  // Predicated region
  $region10: #{nnet_pallas_forward.1} parent=0 // pred_check
    _
  $region11: #{nnet_pallas_forward.1} parent=0 // pred_check_branch
    %29 = sbr.rel (0) target = $region13
  $region12: #{nnet_pallas_forward.1} parent=0 // pred_region
    _
  $region13: #{nnet_pallas_forward.1} parent=0 // pred_fallthru
    _
  // Predicated region
  $region14: #{nnet_pallas_forward.1} parent=0 // pred_check
    _
  $region15: #{nnet_pallas_forward.1} parent=0 // pred_check_branch
    %31 = sbr.rel (0) target = $region17
  $region16: #{nnet_pallas_forward.1} parent=0 // pred_region
    _
  $region17: #{nnet_pallas_forward.1} parent=0 // pred_fallthru
    _
  // Predicated region
  $region18: #{nnet_pallas_forward.1} parent=0 // pred_check
    _
  $region19: #{nnet_pallas_forward.1} parent=0 // pred_check_branch
    %33 = sbr.rel (0) target = $region21
  $region20: #{nnet_pallas_forward.1} parent=0 // pred_region
    _
  $region21: #{nnet_pallas_forward.1} parent=0 // pred_fallthru
    _
  // Predicated region
  $region22: #{nnet_pallas_forward.1} parent=0 // pred_check
    _
  $region23: #{nnet_pallas_forward.1} parent=0 // pred_check_branch
    %35 = sbr.rel (0) target = $region25
  $region24: #{nnet_pallas_forward.1} parent=0 // pred_region
    _
  $region25: #{nnet_pallas_forward.1} parent=0 // pred_fallthru
    _
  // Predicated region
  $region26: #{nnet_pallas_forward.1} parent=0 // pred_check
    _
  $region27: #{nnet_pallas_forward.1} parent=0 // pred_check_branch
    %37 = sbr.rel (0) target = $region29
  $region28: #{nnet_pallas_forward.1} parent=0 // pred_region
    _
  $region29: #{nnet_pallas_forward.1} parent=0 // pred_fallthru
    _
  // Predicated region
  $region30: #{nnet_pallas_forward.1} parent=0 // pred_check
    _
  $region31: #{nnet_pallas_forward.1} parent=0 // pred_check_branch
    %39 = sbr.rel (0) target = $region33
  $region32: #{nnet_pallas_forward.1} parent=0 // pred_region
    _
  $region33: #{nnet_pallas_forward.1} parent=0 // pred_fallthru
    _
  // Predicated region
  $region34: #{nnet_pallas_forward.1} parent=0 // pred_check
    _
  $region35: #{nnet_pallas_forward.1} parent=0 // pred_check_branch
    %41 = sbr.rel (0) target = $region37
  $region36: #{nnet_pallas_forward.1} parent=0 // pred_region
    _
  $region37: #{nnet_pallas_forward.1} parent=0 // pred_fallthru
    _
  // Predicated region
  $region38: #{nnet_pallas_forward.1} parent=0 // pred_check
    _
  $region39: #{nnet_pallas_forward.1} parent=0 // pred_check_branch
    %43 = sbr.rel (0) target = $region41
  $region40: #{nnet_pallas_forward.1} parent=0 // pred_region
    _
  $region41: #{nnet_pallas_forward.1} parent=0 // pred_fallthru
    _
  // Predicated region
  $region42: #{nnet_pallas_forward.1} parent=0 // pred_check
    _
  $region43: #{nnet_pallas_forward.1} parent=0 // pred_check_branch
    %45 = sbr.rel (0) target = $region45
  $region44: #{nnet_pallas_forward.1} parent=0 // pred_region
    _
  $region45: #{nnet_pallas_forward.1} parent=0 // pred_fallthru
    _
  // Predicated region
  $region46: #{nnet_pallas_forward.1} parent=0 // pred_check
    _
  $region47: #{nnet_pallas_forward.1} parent=0 // pred_check_branch
    %47 = sbr.rel (0) target = $region49
  $region48: #{nnet_pallas_forward.1} parent=0 // pred_region
    _
  $region49: #{nnet_pallas_forward.1} parent=0 // pred_fallthru
    _
  // Predicated region
  $region50: #{nnet_pallas_forward.1} parent=0 // pred_check
    _
  $region51: #{nnet_pallas_forward.1} parent=0 // pred_check_branch
    %49 = sbr.rel (0) target = $region53
  $region52: #{nnet_pallas_forward.1} parent=0 // pred_region
    _
  $region53: #{nnet_pallas_forward.1} parent=0 // pred_fallthru
    _
  // Predicated region
  $region54: #{nnet_pallas_forward.1} parent=0 // pred_check
    _
  $region55: #{nnet_pallas_forward.1} parent=0 // pred_check_branch
    %51 = sbr.rel (0) target = $region57
  $region56: #{nnet_pallas_forward.1} parent=0 // pred_region
    _
  $region57: #{nnet_pallas_forward.1} parent=0 // pred_fallthru
    _
  // Predicated region
  $region58: #{nnet_pallas_forward.1} parent=0 // pred_check
    _
  $region59: #{nnet_pallas_forward.1} parent=0 // pred_check_branch
    %53 = sbr.rel (0) target = $region61
  $region60: #{nnet_pallas_forward.1} parent=0 // pred_region
    _
  $region61: #{nnet_pallas_forward.1} parent=0 // pred_fallthru
    _
  // Predicated region
  $region62: #{nnet_pallas_forward.1} parent=0 // pred_check
    _
  $region63: #{nnet_pallas_forward.1} parent=0 // pred_check_branch
    %55 = sbr.rel (0) target = $region65
  $region64: #{nnet_pallas_forward.1} parent=0 // pred_region
    _
  $region65: #{nnet_pallas_forward.1} parent=0 // pred_fallthru
    _
  // Predicated region
  $region66: #{nnet_pallas_forward.1} parent=0 // pred_check
    _
  $region67: #{nnet_pallas_forward.1} parent=0 // pred_check_branch
    %57 = sbr.rel (0) target = $region69
  $region68: #{nnet_pallas_forward.1} parent=0 // pred_region
    _
  $region69: #{nnet_pallas_forward.1} parent=0 // pred_fallthru
    _
  // Predicated region
  $region70: #{nnet_pallas_forward.1} parent=0 // pred_check
    _
  $region71: #{nnet_pallas_forward.1} parent=0 // pred_check_branch
    %59 = sbr.rel (0) target = $region73
  $region72: #{nnet_pallas_forward.1} parent=0 // pred_region
    _
  $region73: #{nnet_pallas_forward.1} parent=0 // pred_fallthru
    _
  // Predicated region
  $region74: #{nnet_pallas_forward.1} parent=0 // pred_check
    _
  $region75: #{nnet_pallas_forward.1} parent=0 // pred_check_branch
    %61 = sbr.rel (0) target = $region77
  $region76: #{nnet_pallas_forward.1} parent=0 // pred_region
    _
  $region77: #{nnet_pallas_forward.1} parent=0 // pred_fallthru
    _
  %v63 = vld [vmem:[%s0] sm:$0xff]
  %v64 = vld [vmem:[%s0 + $0x8] sm:$0xff]
  %v65 = vld [vmem:[%s2] sm:$0xf]
  %v66 = vld [vmem:[%s2 + $0x4] sm:$0xf]
  %v67 = vld [vmem:[%s2 + $0x8] sm:$0xf]
  %v68 = vld [vmem:[%s2 + $0xc] sm:$0xf]
  %v69 = vld [vmem:[%s2 + $0x10] sm:$0xf]
  %v70 = vld [vmem:[%s2 + $0x14] sm:$0xf]
  %v71 = vld [vmem:[%s2 + $0x18] sm:$0xf]
  %v72 = vld [vmem:[%s2 + $0x1c] sm:$0xf]
  %v73 = vld [vmem:[%s2 + $0x20] sm:$0xf]
  %v74 = vld [vmem:[%s2 + $0x24] sm:$0xf]
  %v75 = vld [vmem:[%s2 + $0x28] sm:$0xf]
  %v76 = vld [vmem:[%s2 + $0x2c] sm:$0xf]
  %v77 = vld [vmem:[%s2 + $0x30] sm:$0xf]
  %v78 = vld [vmem:[%s2 + $0x34] sm:$0xf]
  %v79 = vld [vmem:[%s2 + $0x38] sm:$0xf]
  %v80 = vld [vmem:[%s2 + $0x3c] sm:$0xf]
  %v81 = vld [vmem:[%s2 + $0x40] sm:$0xf]
  %v82 = vld [vmem:[%s2 + $0x44] sm:$0xf]
  %v83 = vld [vmem:[%s2 + $0x48] sm:$0xf]
  %v84 = vld [vmem:[%s2 + $0x4c] sm:$0xf]
  %v85 = vld [vmem:[%s2 + $0x50] sm:$0xf]
  %v86 = vld [vmem:[%s2 + $0x54] sm:$0xf]
  %v87 = vld [vmem:[%s2 + $0x58] sm:$0xf]
  %v88 = vld [vmem:[%s2 + $0x5c] sm:$0xf]
  %v89 = vld [vmem:[%s2 + $0x60] sm:$0xf]
  %v90 = vld [vmem:[%s2 + $0x64] sm:$0xf]
  %v91 = vld [vmem:[%s2 + $0x68] sm:$0xf]
  %v92 = vld [vmem:[%s2 + $0x6c] sm:$0xf]
  %v93 = vld [vmem:[%s2 + $0x70] sm:$0xf]
  %v94 = vld [vmem:[%s2 + $0x74] sm:$0xf]
  %v95 = vld [vmem:[%s2 + $0x78] sm:$0xf]
  %v96 = vld [vmem:[%s2 + $0x7c] sm:$0xf]
  %v97 = vld [vmem:[%s2 + $0x80] sm:$0xf]
  %v98 = vld [vmem:[%s2 + $0x84] sm:$0xf]
  %v99 = vld [vmem:[%s2 + $0x88] sm:$0xf]
  %v100 = vld [vmem:[%s2 + $0x8c] sm:$0xf]
  %v101 = vld [vmem:[%s2 + $0x90] sm:$0xf]
  %v102 = vld [vmem:[%s2 + $0x94] sm:$0xf]
  %v103 = vld [vmem:[%s2 + $0x98] sm:$0xf]
  %v104 = vld [vmem:[%s2 + $0x9c] sm:$0xf]
  %v105 = vld [vmem:[%s2 + $0xa0] sm:$0xf]
  %v106 = vld [vmem:[%s2 + $0xa4] sm:$0xf]
  %v107 = vld [vmem:[%s2 + $0xa8] sm:$0xf]
  %v108 = vld [vmem:[%s2 + $0xac] sm:$0xf]
  %v109 = vld [vmem:[%s2 + $0xb0] sm:$0xf]
  %v110 = vld [vmem:[%s2 + $0xb4] sm:$0xf]
  %v111 = vld [vmem:[%s2 + $0xb8] sm:$0xf]
  %v112 = vld [vmem:[%s2 + $0xbc] sm:$0xf]
  %v113 = vld [vmem:[%s2 + $0xc0] sm:$0xf]
  %v114 = vld [vmem:[%s2 + $0xc4] sm:$0xf]
  %v115 = vld [vmem:[%s2 + $0xc8] sm:$0xf]
  %v116 = vld [vmem:[%s2 + $0xcc] sm:$0xf]
  %v117 = vld [vmem:[%s2 + $0xd0] sm:$0xf]
  %v118 = vld [vmem:[%s2 + $0xd4] sm:$0xf]
  %v119 = vld [vmem:[%s2 + $0xd8] sm:$0xf]
  %v120 = vld [vmem:[%s2 + $0xdc] sm:$0xf]
  %v121 = vld [vmem:[%s2 + $0xe0] sm:$0xf]
  %v122 = vld [vmem:[%s2 + $0xe4] sm:$0xf]
  %v123 = vld [vmem:[%s2 + $0xe8] sm:$0xf]
  %v124 = vld [vmem:[%s2 + $0xec] sm:$0xf]
  %v125 = vld [vmem:[%s2 + $0xf0] sm:$0xf]
  %v126 = vld [vmem:[%s2 + $0xf4] sm:$0xf]
  %v127 = vld [vmem:[%s2 + $0xf8] sm:$0xf]
  %v128 = vld [vmem:[%s2 + $0xfc] sm:$0xf]
  %v129 = vld [vmem:[%s3] sm:$0x1]
  %v131 = vlaneseq
  %v132 = vshrl.u32 %v131, 7
  %v133 = vsub.s32 0, %v132
  %v134 = vrot.slane %v129, %v133
  %v138 = vunpack.c.l.b16 %v63
  %v139 = vunpack.c.h.b16 %v63
  %v140 = vunpack.c.l.b16 %v64
  %v141 = vunpack.c.h.b16 %v64
  %v142 = vpack.c.b16 %v138, %v138
  %v143 = vpack.c.b16 %v139, %v139
  %v144 = vpack.c.b16 %v140, %v140
  %v145 = vpack.c.b16 %v141, %v141
  %v214 = vunpack.c.l.b16 %v65
  %v215 = vunpack.c.l.b16 %v66
  %v216 = vunpack.c.l.b16 %v67
  %v217 = vunpack.c.l.b16 %v68
  %v218 = vunpack.c.l.b16 %v69
  %v219 = vunpack.c.l.b16 %v70
  %v220 = vunpack.c.l.b16 %v71
  %v221 = vunpack.c.l.b16 %v72
  %v222 = vunpack.c.l.b16 %v73
  %v223 = vunpack.c.l.b16 %v74
  %v224 = vunpack.c.l.b16 %v75
  %v225 = vunpack.c.l.b16 %v76
  %v226 = vunpack.c.l.b16 %v77
  %v227 = vunpack.c.l.b16 %v78
  %v228 = vunpack.c.l.b16 %v79
  %v229 = vunpack.c.l.b16 %v80
  %v230 = vunpack.c.l.b16 %v81
  %v231 = vunpack.c.l.b16 %v82
  %v232 = vunpack.c.l.b16 %v83
  %v233 = vunpack.c.l.b16 %v84
  %v234 = vunpack.c.l.b16 %v85
  %v235 = vunpack.c.l.b16 %v86
  %v236 = vunpack.c.l.b16 %v87
  %v237 = vunpack.c.l.b16 %v88
  %v238 = vunpack.c.l.b16 %v89
  %v239 = vunpack.c.l.b16 %v90
  %v240 = vunpack.c.l.b16 %v91
  %v241 = vunpack.c.l.b16 %v92
  %v242 = vunpack.c.l.b16 %v93
  %v243 = vunpack.c.l.b16 %v94
  %v244 = vunpack.c.l.b16 %v95
  %v245 = vunpack.c.l.b16 %v96
  %v246 = vunpack.c.l.b16 %v97
  %v247 = vunpack.c.l.b16 %v98
  %v248 = vunpack.c.l.b16 %v99
  %v249 = vunpack.c.l.b16 %v100
  %v250 = vunpack.c.l.b16 %v101
  %v251 = vunpack.c.l.b16 %v102
  %v252 = vunpack.c.l.b16 %v103
  %v253 = vunpack.c.l.b16 %v104
  %v254 = vunpack.c.l.b16 %v105
  %v255 = vunpack.c.l.b16 %v106
  %v256 = vunpack.c.l.b16 %v107
  %v257 = vunpack.c.l.b16 %v108
  %v258 = vunpack.c.l.b16 %v109
  %v259 = vunpack.c.l.b16 %v110
  %v260 = vunpack.c.l.b16 %v111
  %v261 = vunpack.c.l.b16 %v112
  %v262 = vunpack.c.l.b16 %v113
  %v263 = vunpack.c.l.b16 %v114
  %v264 = vunpack.c.l.b16 %v115
  %v265 = vunpack.c.l.b16 %v116
  %v266 = vunpack.c.l.b16 %v117
  %v267 = vunpack.c.l.b16 %v118
  %v268 = vunpack.c.l.b16 %v119
  %v269 = vunpack.c.l.b16 %v120
  %v270 = vunpack.c.l.b16 %v121
  %v271 = vunpack.c.l.b16 %v122
  %v272 = vunpack.c.l.b16 %v123
  %v273 = vunpack.c.l.b16 %v124
  %v274 = vunpack.c.l.b16 %v125
  %v275 = vunpack.c.l.b16 %v126
  %v276 = vunpack.c.l.b16 %v127
  %v277 = vunpack.c.l.b16 %v128
  %v278 = vpack.c.b16 %v215, %v214
  %v279 = vpack.c.b16 %v217, %v216
  %v280 = vpack.c.b16 %v219, %v218
  %v281 = vpack.c.b16 %v221, %v220
  %v282 = vpack.c.b16 %v223, %v222
  %v283 = vpack.c.b16 %v225, %v224
  %v284 = vpack.c.b16 %v227, %v226
  %v285 = vpack.c.b16 %v229, %v228
  %v286 = vpack.c.b16 %v231, %v230
  %v287 = vpack.c.b16 %v233, %v232
  %v288 = vpack.c.b16 %v235, %v234
  %v289 = vpack.c.b16 %v237, %v236
  %v290 = vpack.c.b16 %v239, %v238
  %v291 = vpack.c.b16 %v241, %v240
  %v292 = vpack.c.b16 %v243, %v242
  %v293 = vpack.c.b16 %v245, %v244
  %v294 = vpack.c.b16 %v247, %v246
  %v295 = vpack.c.b16 %v249, %v248
  %v296 = vpack.c.b16 %v251, %v250
  %v297 = vpack.c.b16 %v253, %v252
  %v298 = vpack.c.b16 %v255, %v254
  %v299 = vpack.c.b16 %v257, %v256
  %v300 = vpack.c.b16 %v259, %v258
  %v301 = vpack.c.b16 %v261, %v260
  %v302 = vpack.c.b16 %v263, %v262
  %v303 = vpack.c.b16 %v265, %v264
  %v304 = vpack.c.b16 %v267, %v266
  %v305 = vpack.c.b16 %v269, %v268
  %v306 = vpack.c.b16 %v271, %v270
  %v307 = vpack.c.b16 %v273, %v272
  %v308 = vpack.c.b16 %v275, %v274
  %v309 = vpack.c.b16 %v277, %v276
  %342 = vmatprep.subr.bf16.mxu0 0
  %343 = vmatpush1.bf16.msra.mxu0 %v285
  %344 = vmatprep.subr.bf16.mxu0 0
  %345 = vmatpush1.bf16.msra.mxu0 %v284
  %346 = vmatprep.subr.bf16.mxu0 0
  %347 = vmatpush1.bf16.msra.mxu0 %v283
  %348 = vmatprep.subr.bf16.mxu0 0
  %349 = vmatpush1.bf16.msra.mxu0 %v282
  %350 = vmatprep.subr.bf16.mxu0 0
  %351 = vmatpush1.bf16.msra.mxu0 %v281
  %352 = vmatprep.subr.bf16.mxu0 0
  %353 = vmatpush1.bf16.msra.mxu0 %v280
  %354 = vmatprep.subr.bf16.mxu0 0
  %355 = vmatpush1.bf16.msra.mxu0 %v279
  %356 = vmatprep.subr.bf16.mxu0 0
  %357 = vmatpush1.bf16.msra.mxu0 %v278
  %358 = vmatprep.subr.bf16.mxu0 0
  %359 = vmatpush2.bf16.msra.mxu0 %v293
  %360 = vmatprep.subr.bf16.mxu0 0
  %361 = vmatpush2.bf16.msra.mxu0 %v292
  %362 = vmatprep.subr.bf16.mxu0 0
  %363 = vmatpush2.bf16.msra.mxu0 %v291
  %364 = vmatprep.subr.bf16.mxu0 0
  %365 = vmatpush2.bf16.msra.mxu0 %v290
  %366 = vmatprep.subr.bf16.mxu0 0
  %367 = vmatpush2.bf16.msra.mxu0 %v289
  %368 = vmatprep.subr.bf16.mxu0 0
  %369 = vmatpush2.bf16.msra.mxu0 %v288
  %370 = vmatprep.subr.bf16.mxu0 0
  %371 = vmatpush2.bf16.msra.mxu0 %v287
  %372 = vmatprep.subr.bf16.mxu0 0
  %373 = vmatpush2.bf16.msra.mxu0 %v286
  %374 = vmatprep.mubr.bf16.mxu0 %v143
  %375 = vmatmul.mubr.bf16.gmra.mxu0 %v142
  %v376 = vpop.f32.mrf.mxu0
  %v377 = vadd.f32 %v134, %v376
  %v378 = vpop.f32.mrf.mxu0
  %v379 = vpop.f32.mrf.mxu0
  %v380 = vpop.f32.mrf.mxu0
  %381 = vdwg.mxu0
  %382 = vmatprep.subr.bf16.mxu0 0
  %383 = vmatpush1.bf16.msra.mxu0 %v301
  %384 = vmatprep.subr.bf16.mxu0 0
  %385 = vmatpush1.bf16.msra.mxu0 %v300
  %386 = vmatprep.subr.bf16.mxu0 0
  %387 = vmatpush1.bf16.msra.mxu0 %v299
  %388 = vmatprep.subr.bf16.mxu0 0
  %389 = vmatpush1.bf16.msra.mxu0 %v298
  %390 = vmatprep.subr.bf16.mxu0 0
  %391 = vmatpush1.bf16.msra.mxu0 %v297
  %392 = vmatprep.subr.bf16.mxu0 0
  %393 = vmatpush1.bf16.msra.mxu0 %v296
  %394 = vmatprep.subr.bf16.mxu0 0
  %395 = vmatpush1.bf16.msra.mxu0 %v295
  %396 = vmatprep.subr.bf16.mxu0 0
  %397 = vmatpush1.bf16.msra.mxu0 %v294
  %398 = vmatprep.subr.bf16.mxu0 0
  %399 = vmatpush2.bf16.msra.mxu0 %v309
  %400 = vmatprep.subr.bf16.mxu0 0
  %401 = vmatpush2.bf16.msra.mxu0 %v308
  %402 = vmatprep.subr.bf16.mxu0 0
  %403 = vmatpush2.bf16.msra.mxu0 %v307
  %404 = vmatprep.subr.bf16.mxu0 0
  %405 = vmatpush2.bf16.msra.mxu0 %v306
  %406 = vmatprep.subr.bf16.mxu0 0
  %407 = vmatpush2.bf16.msra.mxu0 %v305
  %408 = vmatprep.subr.bf16.mxu0 0
  %409 = vmatpush2.bf16.msra.mxu0 %v304
  %410 = vmatprep.subr.bf16.mxu0 0
  %411 = vmatpush2.bf16.msra.mxu0 %v303
  %412 = vmatprep.subr.bf16.mxu0 0
  %413 = vmatpush2.bf16.msra.mxu0 %v302
  %414 = vmatprep.mubr.bf16.mxu0 %v145
  %415 = vmatmul.mubr.bf16.gmra.mxu0 %v144
  %v416 = vpop.f32.mrf.mxu0
  %v417 = vadd.f32 %v377, %v416
  %v418 = vpop.f32.mrf.mxu0
  %v419 = vpop.f32.mrf.mxu0
  %v420 = vpop.f32.mrf.mxu0
  %421 = vdwg.mxu0
  %v422 = vmax.f32 %v417, 0.0
  %v423 = vpack.c.bf16 %v422, %v422
  %v424 = vld [vmem:[%s4] sm:$0xf]
  %v425 = vld [vmem:[%s4 + $0x4] sm:$0xf]
  %v426 = vld [vmem:[%s4 + $0x8] sm:$0xf]
  %v427 = vld [vmem:[%s4 + $0xc] sm:$0xf]
  %v428 = vld [vmem:[%s4 + $0x10] sm:$0xf]
  %v429 = vld [vmem:[%s4 + $0x14] sm:$0xf]
  %v430 = vld [vmem:[%s4 + $0x18] sm:$0xf]
  %v431 = vld [vmem:[%s4 + $0x1c] sm:$0xf]
  %v432 = vld [vmem:[%s4 + $0x20] sm:$0xf]
  %v433 = vld [vmem:[%s4 + $0x24] sm:$0xf]
  %v434 = vld [vmem:[%s4 + $0x28] sm:$0xf]
  %v435 = vld [vmem:[%s4 + $0x2c] sm:$0xf]
  %v436 = vld [vmem:[%s4 + $0x30] sm:$0xf]
  %v437 = vld [vmem:[%s4 + $0x34] sm:$0xf]
  %v438 = vld [vmem:[%s4 + $0x38] sm:$0xf]
  %v439 = vld [vmem:[%s4 + $0x3c] sm:$0xf]
  %v440 = vld [vmem:[%s5] sm:$0x1]
  %v442 = vlaneseq
  %v443 = vshrl.u32 %v442, 7
  %v444 = vsub.s32 0, %v443
  %v445 = vrot.slane %v440, %v444
  %v463 = vunpack.c.l.b16 %v424
  %v464 = vunpack.c.l.b16 %v425
  %v465 = vunpack.c.l.b16 %v426
  %v466 = vunpack.c.l.b16 %v427
  %v467 = vunpack.c.l.b16 %v428
  %v468 = vunpack.c.l.b16 %v429
  %v469 = vunpack.c.l.b16 %v430
  %v470 = vunpack.c.l.b16 %v431
  %v471 = vunpack.c.l.b16 %v432
  %v472 = vunpack.c.l.b16 %v433
  %v473 = vunpack.c.l.b16 %v434
  %v474 = vunpack.c.l.b16 %v435
  %v475 = vunpack.c.l.b16 %v436
  %v476 = vunpack.c.l.b16 %v437
  %v477 = vunpack.c.l.b16 %v438
  %v478 = vunpack.c.l.b16 %v439
  %v479 = vpack.c.b16 %v464, %v463
  %v480 = vpack.c.b16 %v466, %v465
  %v481 = vpack.c.b16 %v468, %v467
  %v482 = vpack.c.b16 %v470, %v469
  %v483 = vpack.c.b16 %v472, %v471
  %v484 = vpack.c.b16 %v474, %v473
  %v485 = vpack.c.b16 %v476, %v475
  %v486 = vpack.c.b16 %v478, %v477
  %495 = vmatprep.subr.bf16.mxu0 0
  %496 = vmatpush1.bf16.msra.mxu0 %v486
  %497 = vmatprep.subr.bf16.mxu0 0
  %498 = vmatpush1.bf16.msra.mxu0 %v485
  %499 = vmatprep.subr.bf16.mxu0 0
  %500 = vmatpush1.bf16.msra.mxu0 %v484
  %501 = vmatprep.subr.bf16.mxu0 0
  %502 = vmatpush1.bf16.msra.mxu0 %v483
  %503 = vmatprep.subr.bf16.mxu0 0
  %504 = vmatpush1.bf16.msra.mxu0 %v482
  %505 = vmatprep.subr.bf16.mxu0 0
  %506 = vmatpush1.bf16.msra.mxu0 %v481
  %507 = vmatprep.subr.bf16.mxu0 0
  %508 = vmatpush1.bf16.msra.mxu0 %v480
  %509 = vmatprep.subr.bf16.mxu0 0
  %510 = vmatpush1.bf16.msra.mxu0 %v479
  %511 = vmatprep.subr.bf16.mxu0 0
  %512 = vmatpush2.bf16.msra.mxu0 0
  %513 = vmatprep.subr.bf16.mxu0 0
  %514 = vmatpush2.bf16.msra.mxu0 0
  %515 = vmatprep.subr.bf16.mxu0 0
  %516 = vmatpush2.bf16.msra.mxu0 0
  %517 = vmatprep.subr.bf16.mxu0 0
  %518 = vmatpush2.bf16.msra.mxu0 0
  %519 = vmatprep.subr.bf16.mxu0 0
  %520 = vmatpush2.bf16.msra.mxu0 0
  %521 = vmatprep.subr.bf16.mxu0 0
  %522 = vmatpush2.bf16.msra.mxu0 0
  %523 = vmatprep.subr.bf16.mxu0 0
  %524 = vmatpush2.bf16.msra.mxu0 0
  %525 = vmatprep.subr.bf16.mxu0 0
  %526 = vmatpush2.bf16.msra.mxu0 0
  %527 = vmatprep.mubr.bf16.mxu0 0
  %528 = vmatmul.mubr.bf16.gmra.mxu0 %v423
  %v529 = vpop.f32.mrf.mxu0
  %v530 = vadd.f32 %v445, %v529
  %v531 = vpop.f32.mrf.mxu0
  %v532 = vpop.f32.mrf.mxu0
  %v533 = vpop.f32.mrf.mxu0
  %534 = vdwg.mxu0
  %v535 = vmax.f32 %v530, 0.0
  %v536 = vpack.c.bf16 %v535, %v535
  %v537 = vld [vmem:[%s6] sm:$0xff]
  %v538 = vld [vmem:[%s6 + $0x8] sm:$0xff]
  %v539 = vld [vmem:[%s6 + $0x10] sm:$0xff]
  %v540 = vld [vmem:[%s6 + $0x18] sm:$0xff]
  %v541 = vld [vmem:[%s6 + $0x20] sm:$0xff]
  %v542 = vld [vmem:[%s6 + $0x28] sm:$0xff]
  %v543 = vld [vmem:[%s6 + $0x30] sm:$0xff]
  %v544 = vld [vmem:[%s6 + $0x38] sm:$0xff]
  %v545 = vld [vmem:[%s7] sm:$0xf]
  %v547 = vlaneseq
  %v548 = vshrl.u32 %v547, 7
  %v549 = vsub.s32 0, %v548
  %v550 = vrot.slane %v545, %v549
  %v551 = vlaneseq
  %v552 = vshrl.u32 %v551, 7
  %v553 = vsub.s32 1, %v552
  %v554 = vrot.slane %v545, %v553
  %v555 = vlaneseq
  %v556 = vshrl.u32 %v555, 7
  %v557 = vsub.s32 2, %v556
  %v558 = vrot.slane %v545, %v557
  %v559 = vlaneseq
  %v560 = vshrl.u32 %v559, 7
  %v561 = vsub.s32 3, %v560
  %v562 = vrot.slane %v545, %v561
  %v575 = vunpack.c.l.b16 %v537
  %v576 = vunpack.c.h.b16 %v537
  %v577 = vunpack.c.l.b16 %v538
  %v578 = vunpack.c.h.b16 %v538
  %v579 = vunpack.c.l.b16 %v539
  %v580 = vunpack.c.h.b16 %v539
  %v581 = vunpack.c.l.b16 %v540
  %v582 = vunpack.c.h.b16 %v540
  %v583 = vunpack.c.l.b16 %v541
  %v584 = vunpack.c.h.b16 %v541
  %v585 = vunpack.c.l.b16 %v542
  %v586 = vunpack.c.h.b16 %v542
  %v587 = vunpack.c.l.b16 %v543
  %v588 = vunpack.c.h.b16 %v543
  %v589 = vunpack.c.l.b16 %v544
  %v590 = vunpack.c.h.b16 %v544
  %v591 = vpack.c.b16 %v579, %v575
  %v592 = vpack.c.b16 %v580, %v576
  %v593 = vpack.c.b16 %v581, %v577
  %v594 = vpack.c.b16 %v582, %v578
  %v595 = vpack.c.b16 %v587, %v583
  %v596 = vpack.c.b16 %v588, %v584
  %v597 = vpack.c.b16 %v589, %v585
  %v598 = vpack.c.b16 %v590, %v586
  %vm607 = vcmask 261120
  %v609 = vsel %vm607, %v536, 0
  %611 = vmatprep.subr.bf16.mxu0 0
  %612 = vmatpush1.bf16.msra.mxu0 0
  %613 = vmatprep.subr.bf16.mxu0 0
  %614 = vmatpush1.bf16.msra.mxu0 0
  %615 = vmatprep.subr.bf16.mxu0 0
  %616 = vmatpush1.bf16.msra.mxu0 0
  %617 = vmatprep.subr.bf16.mxu0 0
  %618 = vmatpush1.bf16.msra.mxu0 0
  %619 = vmatprep.subr.bf16.mxu0 0
  %620 = vmatpush1.bf16.msra.mxu0 0
  %621 = vmatprep.subr.bf16.mxu0 0
  %622 = vmatpush1.bf16.msra.mxu0 0
  %623 = vmatprep.subr.bf16.mxu0 %v596
  %624 = vmatpush1.bf16.msra.mxu0 %v595
  %625 = vmatprep.subr.bf16.mxu0 %v592
  %626 = vmatpush1.bf16.msra.mxu0 %v591
  %627 = vmatprep.subr.bf16.mxu0 0
  %628 = vmatpush2.bf16.msra.mxu0 0
  %629 = vmatprep.subr.bf16.mxu0 0
  %630 = vmatpush2.bf16.msra.mxu0 0
  %631 = vmatprep.subr.bf16.mxu0 0
  %632 = vmatpush2.bf16.msra.mxu0 0
  %633 = vmatprep.subr.bf16.mxu0 0
  %634 = vmatpush2.bf16.msra.mxu0 0
  %635 = vmatprep.subr.bf16.mxu0 0
  %636 = vmatpush2.bf16.msra.mxu0 0
  %637 = vmatprep.subr.bf16.mxu0 0
  %638 = vmatpush2.bf16.msra.mxu0 0
  %639 = vmatprep.subr.bf16.mxu0 0
  %640 = vmatpush2.bf16.msra.mxu0 0
  %641 = vmatprep.subr.bf16.mxu0 0
  %642 = vmatpush2.bf16.msra.mxu0 0
  %643 = vmatprep.mubr.bf16.mxu0 0
  %644 = vmatmul.mubr.bf16.gmra.mxu0 %v609
  %v645 = vpop.f32.mrf.mxu0
  %v646 = vadd.f32 %v550, %v645
  %v647 = vpop.f32.mrf.mxu0
  %v648 = vadd.f32 %v554, %v647
  %v649 = vpop.f32.mrf.mxu0
  %v650 = vpop.f32.mrf.mxu0
  %651 = vdwg.mxu0
  %652 = vmatprep.subr.bf16.mxu0 0
  %653 = vmatpush1.bf16.msra.mxu0 0
  %654 = vmatprep.subr.bf16.mxu0 0
  %655 = vmatpush1.bf16.msra.mxu0 0
  %656 = vmatprep.subr.bf16.mxu0 0
  %657 = vmatpush1.bf16.msra.mxu0 0
  %658 = vmatprep.subr.bf16.mxu0 0
  %659 = vmatpush1.bf16.msra.mxu0 0
  %660 = vmatprep.subr.bf16.mxu0 0
  %661 = vmatpush1.bf16.msra.mxu0 0
  %662 = vmatprep.subr.bf16.mxu0 0
  %663 = vmatpush1.bf16.msra.mxu0 0
  %664 = vmatprep.subr.bf16.mxu0 %v598
  %665 = vmatpush1.bf16.msra.mxu0 %v597
  %666 = vmatprep.subr.bf16.mxu0 %v594
  %667 = vmatpush1.bf16.msra.mxu0 %v593
  %668 = vmatprep.subr.bf16.mxu0 0
  %669 = vmatpush2.bf16.msra.mxu0 0
  %670 = vmatprep.subr.bf16.mxu0 0
  %671 = vmatpush2.bf16.msra.mxu0 0
  %672 = vmatprep.subr.bf16.mxu0 0
  %673 = vmatpush2.bf16.msra.mxu0 0
  %674 = vmatprep.subr.bf16.mxu0 0
  %675 = vmatpush2.bf16.msra.mxu0 0
  %676 = vmatprep.subr.bf16.mxu0 0
  %677 = vmatpush2.bf16.msra.mxu0 0
  %678 = vmatprep.subr.bf16.mxu0 0
  %679 = vmatpush2.bf16.msra.mxu0 0
  %680 = vmatprep.subr.bf16.mxu0 0
  %681 = vmatpush2.bf16.msra.mxu0 0
  %682 = vmatprep.subr.bf16.mxu0 0
  %683 = vmatpush2.bf16.msra.mxu0 0
  %684 = vmatprep.mubr.bf16.mxu0 0
  %685 = vmatmul.mubr.bf16.gmra.mxu0 %v609
  %v686 = vpop.f32.mrf.mxu0
  %v687 = vadd.f32 %v558, %v686
  %v688 = vpop.f32.mrf.mxu0
  %v689 = vadd.f32 %v562, %v688
  %v690 = vpop.f32.mrf.mxu0
  %v691 = vpop.f32.mrf.mxu0
  %692 = vdwg.mxu0
  %v693 = vmax.f32 %v646, 0.0
  %v694 = vmax.f32 %v648, 0.0
  %v695 = vmax.f32 %v687, 0.0
  %v696 = vmax.f32 %v689, 0.0
  %v697 = vpack.c.bf16 %v693, %v693
  %v698 = vpack.c.bf16 %v694, %v694
  %v699 = vpack.c.bf16 %v695, %v695
  %v700 = vpack.c.bf16 %v696, %v696
  %v701 = vld [vmem:[%s8] sm:$0xff]
  %v702 = vld [vmem:[%s8 + $0x8] sm:$0xff]
  %v703 = vld [vmem:[%s8 + $0x10] sm:$0xff]
  %v704 = vld [vmem:[%s8 + $0x18] sm:$0xff]
  %v705 = vld [vmem:[%s8 + $0x20] sm:$0xff]
  %v706 = vld [vmem:[%s8 + $0x28] sm:$0xff]
  %v707 = vld [vmem:[%s8 + $0x30] sm:$0xff]
  %v708 = vld [vmem:[%s8 + $0x38] sm:$0xff]
  %v709 = vld [vmem:[%s8 + $0x40] sm:$0xff]
  %v710 = vld [vmem:[%s8 + $0x48] sm:$0xff]
  %v711 = vld [vmem:[%s8 + $0x50] sm:$0xff]
  %v712 = vld [vmem:[%s8 + $0x58] sm:$0xff]
  %v713 = vld [vmem:[%s8 + $0x60] sm:$0xff]
  %v714 = vld [vmem:[%s8 + $0x68] sm:$0xff]
  %v715 = vld [vmem:[%s8 + $0x70] sm:$0xff]
  %v716 = vld [vmem:[%s8 + $0x78] sm:$0xff]
  %v717 = vld [vmem:[%s8 + $0x80] sm:$0xff]
  %v718 = vld [vmem:[%s8 + $0x88] sm:$0xff]
  %v719 = vld [vmem:[%s8 + $0x90] sm:$0xff]
  %v720 = vld [vmem:[%s8 + $0x98] sm:$0xff]
  %v721 = vld [vmem:[%s8 + $0xa0] sm:$0xff]
  %v722 = vld [vmem:[%s8 + $0xa8] sm:$0xff]
  %v723 = vld [vmem:[%s8 + $0xb0] sm:$0xff]
  %v724 = vld [vmem:[%s8 + $0xb8] sm:$0xff]
  %v725 = vld [vmem:[%s8 + $0xc0] sm:$0xff]
  %v726 = vld [vmem:[%s8 + $0xc8] sm:$0xff]
  %v727 = vld [vmem:[%s8 + $0xd0] sm:$0xff]
  %v728 = vld [vmem:[%s8 + $0xd8] sm:$0xff]
  %v729 = vld [vmem:[%s8 + $0xe0] sm:$0xff]
  %v730 = vld [vmem:[%s8 + $0xe8] sm:$0xff]
  %v731 = vld [vmem:[%s8 + $0xf0] sm:$0xff]
  %v732 = vld [vmem:[%s8 + $0xf8] sm:$0xff]
  %v733 = vld [vmem:[%s8 + $0x100] sm:$0xff]
  %v734 = vld [vmem:[%s8 + $0x108] sm:$0xff]
  %v735 = vld [vmem:[%s8 + $0x110] sm:$0xff]
  %v736 = vld [vmem:[%s8 + $0x118] sm:$0xff]
  %v737 = vld [vmem:[%s8 + $0x120] sm:$0xff]
  %v738 = vld [vmem:[%s8 + $0x128] sm:$0xff]
  %v739 = vld [vmem:[%s8 + $0x130] sm:$0xff]
  %v740 = vld [vmem:[%s8 + $0x138] sm:$0xff]
  %v741 = vld [vmem:[%s8 + $0x140] sm:$0xff]
  %v742 = vld [vmem:[%s8 + $0x148] sm:$0xff]
  %v743 = vld [vmem:[%s8 + $0x150] sm:$0xff]
  %v744 = vld [vmem:[%s8 + $0x158] sm:$0xff]
  %v745 = vld [vmem:[%s8 + $0x160] sm:$0xff]
  %v746 = vld [vmem:[%s8 + $0x168] sm:$0xff]
  %v747 = vld [vmem:[%s8 + $0x170] sm:$0xff]
  %v748 = vld [vmem:[%s8 + $0x178] sm:$0xff]
  %v749 = vld [vmem:[%s8 + $0x180] sm:$0xff]
  %v750 = vld [vmem:[%s8 + $0x188] sm:$0xff]
  %v751 = vld [vmem:[%s8 + $0x190] sm:$0xff]
  %v752 = vld [vmem:[%s8 + $0x198] sm:$0xff]
  %v753 = vld [vmem:[%s8 + $0x1a0] sm:$0xff]
  %v754 = vld [vmem:[%s8 + $0x1a8] sm:$0xff]
  %v755 = vld [vmem:[%s8 + $0x1b0] sm:$0xff]
  %v756 = vld [vmem:[%s8 + $0x1b8] sm:$0xff]
  %v757 = vld [vmem:[%s8 + $0x1c0] sm:$0xff]
  %v758 = vld [vmem:[%s8 + $0x1c8] sm:$0xff]
  %v759 = vld [vmem:[%s8 + $0x1d0] sm:$0xff]
  %v760 = vld [vmem:[%s8 + $0x1d8] sm:$0xff]
  %v761 = vld [vmem:[%s8 + $0x1e0] sm:$0xff]
  %v762 = vld [vmem:[%s8 + $0x1e8] sm:$0xff]
  %v763 = vld [vmem:[%s8 + $0x1f0] sm:$0xff]
  %v764 = vld [vmem:[%s8 + $0x1f8] sm:$0xff]
  %v765 = vld [vmem:[%s9] sm:$0x3]
  %v767 = vlaneseq
  %v768 = vshrl.u32 %v767, 7
  %v769 = vsub.s32 0, %v768
  %v770 = vrot.slane %v765, %v769
  %v771 = vlaneseq
  %v772 = vshrl.u32 %v771, 7
  %v773 = vsub.s32 1, %v772
  %v774 = vrot.slane %v765, %v773
  %v841 = vunpack.c.l.b16 %v701
  %v842 = vunpack.c.h.b16 %v701
  %v843 = vunpack.c.l.b16 %v702
  %v844 = vunpack.c.h.b16 %v702
  %v845 = vunpack.c.l.b16 %v703
  %v846 = vunpack.c.h.b16 %v703
  %v847 = vunpack.c.l.b16 %v704
  %v848 = vunpack.c.h.b16 %v704
  %v849 = vunpack.c.l.b16 %v705
  %v850 = vunpack.c.h.b16 %v705
  %v851 = vunpack.c.l.b16 %v706
  %v852 = vunpack.c.h.b16 %v706
  %v853 = vunpack.c.l.b16 %v707
  %v854 = vunpack.c.h.b16 %v707
  %v855 = vunpack.c.l.b16 %v708
  %v856 = vunpack.c.h.b16 %v708
  %v857 = vunpack.c.l.b16 %v709
  %v858 = vunpack.c.h.b16 %v709
  %v859 = vunpack.c.l.b16 %v710
  %v860 = vunpack.c.h.b16 %v710
  %v861 = vunpack.c.l.b16 %v711
  %v862 = vunpack.c.h.b16 %v711
  %v863 = vunpack.c.l.b16 %v712
  %v864 = vunpack.c.h.b16 %v712
  %v865 = vunpack.c.l.b16 %v713
  %v866 = vunpack.c.h.b16 %v713
  %v867 = vunpack.c.l.b16 %v714
  %v868 = vunpack.c.h.b16 %v714
  %v869 = vunpack.c.l.b16 %v715
  %v870 = vunpack.c.h.b16 %v715
  %v871 = vunpack.c.l.b16 %v716
  %v872 = vunpack.c.h.b16 %v716
  %v873 = vunpack.c.l.b16 %v717
  %v874 = vunpack.c.h.b16 %v717
  %v875 = vunpack.c.l.b16 %v718
  %v876 = vunpack.c.h.b16 %v718
  %v877 = vunpack.c.l.b16 %v719
  %v878 = vunpack.c.h.b16 %v719
  %v879 = vunpack.c.l.b16 %v720
  %v880 = vunpack.c.h.b16 %v720
  %v881 = vunpack.c.l.b16 %v721
  %v882 = vunpack.c.h.b16 %v721
  %v883 = vunpack.c.l.b16 %v722
  %v884 = vunpack.c.h.b16 %v722
  %v885 = vunpack.c.l.b16 %v723
  %v886 = vunpack.c.h.b16 %v723
  %v887 = vunpack.c.l.b16 %v724
  %v888 = vunpack.c.h.b16 %v724
  %v889 = vunpack.c.l.b16 %v725
  %v890 = vunpack.c.h.b16 %v725
  %v891 = vunpack.c.l.b16 %v726
  %v892 = vunpack.c.h.b16 %v726
  %v893 = vunpack.c.l.b16 %v727
  %v894 = vunpack.c.h.b16 %v727
  %v895 = vunpack.c.l.b16 %v728
  %v896 = vunpack.c.h.b16 %v728
  %v897 = vunpack.c.l.b16 %v729
  %v898 = vunpack.c.h.b16 %v729
  %v899 = vunpack.c.l.b16 %v730
  %v900 = vunpack.c.h.b16 %v730
  %v901 = vunpack.c.l.b16 %v731
  %v902 = vunpack.c.h.b16 %v731
  %v903 = vunpack.c.l.b16 %v732
  %v904 = vunpack.c.h.b16 %v732
  %v905 = vunpack.c.l.b16 %v733
  %v906 = vunpack.c.h.b16 %v733
  %v907 = vunpack.c.l.b16 %v734
  %v908 = vunpack.c.h.b16 %v734
  %v909 = vunpack.c.l.b16 %v735
  %v910 = vunpack.c.h.b16 %v735
  %v911 = vunpack.c.l.b16 %v736
  %v912 = vunpack.c.h.b16 %v736
  %v913 = vunpack.c.l.b16 %v737
  %v914 = vunpack.c.h.b16 %v737
  %v915 = vunpack.c.l.b16 %v738
  %v916 = vunpack.c.h.b16 %v738
  %v917 = vunpack.c.l.b16 %v739
  %v918 = vunpack.c.h.b16 %v739
  %v919 = vunpack.c.l.b16 %v740
  %v920 = vunpack.c.h.b16 %v740
  %v921 = vunpack.c.l.b16 %v741
  %v922 = vunpack.c.h.b16 %v741
  %v923 = vunpack.c.l.b16 %v742
  %v924 = vunpack.c.h.b16 %v742
  %v925 = vunpack.c.l.b16 %v743
  %v926 = vunpack.c.h.b16 %v743
  %v927 = vunpack.c.l.b16 %v744
  %v928 = vunpack.c.h.b16 %v744
  %v929 = vunpack.c.l.b16 %v745
  %v930 = vunpack.c.h.b16 %v745
  %v931 = vunpack.c.l.b16 %v746
  %v932 = vunpack.c.h.b16 %v746
  %v933 = vunpack.c.l.b16 %v747
  %v934 = vunpack.c.h.b16 %v747
  %v935 = vunpack.c.l.b16 %v748
  %v936 = vunpack.c.h.b16 %v748
  %v937 = vunpack.c.l.b16 %v749
  %v938 = vunpack.c.h.b16 %v749
  %v939 = vunpack.c.l.b16 %v750
  %v940 = vunpack.c.h.b16 %v750
  %v941 = vunpack.c.l.b16 %v751
  %v942 = vunpack.c.h.b16 %v751
  %v943 = vunpack.c.l.b16 %v752
  %v944 = vunpack.c.h.b16 %v752
  %v945 = vunpack.c.l.b16 %v753
  %v946 = vunpack.c.h.b16 %v753
  %v947 = vunpack.c.l.b16 %v754
  %v948 = vunpack.c.h.b16 %v754
  %v949 = vunpack.c.l.b16 %v755
  %v950 = vunpack.c.h.b16 %v755
  %v951 = vunpack.c.l.b16 %v756
  %v952 = vunpack.c.h.b16 %v756
  %v953 = vunpack.c.l.b16 %v757
  %v954 = vunpack.c.h.b16 %v757
  %v955 = vunpack.c.l.b16 %v758
  %v956 = vunpack.c.h.b16 %v758
  %v957 = vunpack.c.l.b16 %v759
  %v958 = vunpack.c.h.b16 %v759
  %v959 = vunpack.c.l.b16 %v760
  %v960 = vunpack.c.h.b16 %v760
  %v961 = vunpack.c.l.b16 %v761
  %v962 = vunpack.c.h.b16 %v761
  %v963 = vunpack.c.l.b16 %v762
  %v964 = vunpack.c.h.b16 %v762
  %v965 = vunpack.c.l.b16 %v763
  %v966 = vunpack.c.h.b16 %v763
  %v967 = vunpack.c.l.b16 %v764
  %v968 = vunpack.c.h.b16 %v764
  %v969 = vpack.c.b16 %v843, %v841
  %v970 = vpack.c.b16 %v844, %v842
  %v971 = vpack.c.b16 %v847, %v845
  %v972 = vpack.c.b16 %v848, %v846
  %v973 = vpack.c.b16 %v851, %v849
  %v974 = vpack.c.b16 %v852, %v850
  %v975 = vpack.c.b16 %v855, %v853
  %v976 = vpack.c.b16 %v856, %v854
  %v977 = vpack.c.b16 %v859, %v857
  %v978 = vpack.c.b16 %v860, %v858
  %v979 = vpack.c.b16 %v863, %v861
  %v980 = vpack.c.b16 %v864, %v862
  %v981 = vpack.c.b16 %v867, %v865
  %v982 = vpack.c.b16 %v868, %v866
  %v983 = vpack.c.b16 %v871, %v869
  %v984 = vpack.c.b16 %v872, %v870
  %v985 = vpack.c.b16 %v875, %v873
  %v986 = vpack.c.b16 %v876, %v874
  %v987 = vpack.c.b16 %v879, %v877
  %v988 = vpack.c.b16 %v880, %v878
  %v989 = vpack.c.b16 %v883, %v881
  %v990 = vpack.c.b16 %v884, %v882
  %v991 = vpack.c.b16 %v887, %v885
  %v992 = vpack.c.b16 %v888, %v886
  %v993 = vpack.c.b16 %v891, %v889
  %v994 = vpack.c.b16 %v892, %v890
  %v995 = vpack.c.b16 %v895, %v893
  %v996 = vpack.c.b16 %v896, %v894
  %v997 = vpack.c.b16 %v899, %v897
  %v998 = vpack.c.b16 %v900, %v898
  %v999 = vpack.c.b16 %v903, %v901
  %v1000 = vpack.c.b16 %v904, %v902
  %v1001 = vpack.c.b16 %v907, %v905
  %v1002 = vpack.c.b16 %v908, %v906
  %v1003 = vpack.c.b16 %v911, %v909
  %v1004 = vpack.c.b16 %v912, %v910
  %v1005 = vpack.c.b16 %v915, %v913
  %v1006 = vpack.c.b16 %v916, %v914
  %v1007 = vpack.c.b16 %v919, %v917
  %v1008 = vpack.c.b16 %v920, %v918
  %v1009 = vpack.c.b16 %v923, %v921
  %v1010 = vpack.c.b16 %v924, %v922
  %v1011 = vpack.c.b16 %v927, %v925
  %v1012 = vpack.c.b16 %v928, %v926
  %v1013 = vpack.c.b16 %v931, %v929
  %v1014 = vpack.c.b16 %v932, %v930
  %v1015 = vpack.c.b16 %v935, %v933
  %v1016 = vpack.c.b16 %v936, %v934
  %v1017 = vpack.c.b16 %v939, %v937
  %v1018 = vpack.c.b16 %v940, %v938
  %v1019 = vpack.c.b16 %v943, %v941
  %v1020 = vpack.c.b16 %v944, %v942
  %v1021 = vpack.c.b16 %v947, %v945
  %v1022 = vpack.c.b16 %v948, %v946
  %v1023 = vpack.c.b16 %v951, %v949
  %v1024 = vpack.c.b16 %v952, %v950
  %v1025 = vpack.c.b16 %v955, %v953
  %v1026 = vpack.c.b16 %v956, %v954
  %v1027 = vpack.c.b16 %v959, %v957
  %v1028 = vpack.c.b16 %v960, %v958
  %v1029 = vpack.c.b16 %v963, %v961
  %v1030 = vpack.c.b16 %v964, %v962
  %v1031 = vpack.c.b16 %v967, %v965
  %v1032 = vpack.c.b16 %v968, %v966
  %1097 = vmatprep.subr.bf16.mxu0 %v984
  %1098 = vmatpush1.bf16.msra.mxu0 %v983
  %1099 = vmatprep.subr.bf16.mxu0 %v982
  %1100 = vmatpush1.bf16.msra.mxu0 %v981
  %1101 = vmatprep.subr.bf16.mxu0 %v980
  %1102 = vmatpush1.bf16.msra.mxu0 %v979
  %1103 = vmatprep.subr.bf16.mxu0 %v978
  %1104 = vmatpush1.bf16.msra.mxu0 %v977
  %1105 = vmatprep.subr.bf16.mxu0 %v976
  %1106 = vmatpush1.bf16.msra.mxu0 %v975
  %1107 = vmatprep.subr.bf16.mxu0 %v974
  %1108 = vmatpush1.bf16.msra.mxu0 %v973
  %1109 = vmatprep.subr.bf16.mxu0 %v972
  %1110 = vmatpush1.bf16.msra.mxu0 %v971
  %1111 = vmatprep.subr.bf16.mxu0 %v970
  %1112 = vmatpush1.bf16.msra.mxu0 %v969
  %1113 = vmatprep.subr.bf16.mxu0 %v1000
  %1114 = vmatpush2.bf16.msra.mxu0 %v999
  %1115 = vmatprep.subr.bf16.mxu0 %v998
  %1116 = vmatpush2.bf16.msra.mxu0 %v997
  %1117 = vmatprep.subr.bf16.mxu0 %v996
  %1118 = vmatpush2.bf16.msra.mxu0 %v995
  %1119 = vmatprep.subr.bf16.mxu0 %v994
  %1120 = vmatpush2.bf16.msra.mxu0 %v993
  %1121 = vmatprep.subr.bf16.mxu0 %v992
  %1122 = vmatpush2.bf16.msra.mxu0 %v991
  %1123 = vmatprep.subr.bf16.mxu0 %v990
  %1124 = vmatpush2.bf16.msra.mxu0 %v989
  %1125 = vmatprep.subr.bf16.mxu0 %v988
  %1126 = vmatpush2.bf16.msra.mxu0 %v987
  %1127 = vmatprep.subr.bf16.mxu0 %v986
  %1128 = vmatpush2.bf16.msra.mxu0 %v985
  %1129 = vmatprep.mubr.bf16.mxu0 %v698
  %1130 = vmatmul.mubr.bf16.gmra.mxu0 %v697
  %v1131 = vpop.f32.mrf.mxu0
  %v1132 = vadd.f32 %v770, %v1131
  %v1133 = vpop.f32.mrf.mxu0
  %v1134 = vadd.f32 %v774, %v1133
  %v1135 = vpop.f32.mrf.mxu0
  %v1136 = vpop.f32.mrf.mxu0
  %1137 = vdwg.mxu0
  %1138 = vmatprep.subr.bf16.mxu0 %v1016
  %1139 = vmatpush1.bf16.msra.mxu0 %v1015
  %1140 = vmatprep.subr.bf16.mxu0 %v1014
  %1141 = vmatpush1.bf16.msra.mxu0 %v1013
  %1142 = vmatprep.subr.bf16.mxu0 %v1012
  %1143 = vmatpush1.bf16.msra.mxu0 %v1011
  %1144 = vmatprep.subr.bf16.mxu0 %v1010
  %1145 = vmatpush1.bf16.msra.mxu0 %v1009
  %1146 = vmatprep.subr.bf16.mxu0 %v1008
  %1147 = vmatpush1.bf16.msra.mxu0 %v1007
  %1148 = vmatprep.subr.bf16.mxu0 %v1006
  %1149 = vmatpush1.bf16.msra.mxu0 %v1005
  %1150 = vmatprep.subr.bf16.mxu0 %v1004
  %1151 = vmatpush1.bf16.msra.mxu0 %v1003
  %1152 = vmatprep.subr.bf16.mxu0 %v1002
  %1153 = vmatpush1.bf16.msra.mxu0 %v1001
  %1154 = vmatprep.subr.bf16.mxu0 %v1032
  %1155 = vmatpush2.bf16.msra.mxu0 %v1031
  %1156 = vmatprep.subr.bf16.mxu0 %v1030
  %1157 = vmatpush2.bf16.msra.mxu0 %v1029
  %1158 = vmatprep.subr.bf16.mxu0 %v1028
  %1159 = vmatpush2.bf16.msra.mxu0 %v1027
  %1160 = vmatprep.subr.bf16.mxu0 %v1026
  %1161 = vmatpush2.bf16.msra.mxu0 %v1025
  %1162 = vmatprep.subr.bf16.mxu0 %v1024
  %1163 = vmatpush2.bf16.msra.mxu0 %v1023
  %1164 = vmatprep.subr.bf16.mxu0 %v1022
  %1165 = vmatpush2.bf16.msra.mxu0 %v1021
  %1166 = vmatprep.subr.bf16.mxu0 %v1020
  %1167 = vmatpush2.bf16.msra.mxu0 %v1019
  %1168 = vmatprep.subr.bf16.mxu0 %v1018
  %1169 = vmatpush2.bf16.msra.mxu0 %v1017
  %1170 = vmatprep.mubr.bf16.mxu0 %v700
  %1171 = vmatmul.mubr.bf16.gmra.mxu0 %v699
  %v1172 = vpop.f32.mrf.mxu0
  %v1173 = vadd.f32 %v1132, %v1172
  %v1174 = vpop.f32.mrf.mxu0
  %v1175 = vadd.f32 %v1134, %v1174
  %v1176 = vpop.f32.mrf.mxu0
  %v1177 = vpop.f32.mrf.mxu0
  %1178 = vdwg.mxu0
  %v1179 = vmax.f32 %v1173, 0.0
  %v1180 = vmax.f32 %v1175, 0.0
  %v1181 = vpack.c.bf16 %v1179, %v1179
  %v1182 = vpack.c.bf16 %v1180, %v1180
  %v1183 = vld [vmem:[%s1] sm:$0xf]
  %v1184 = vld [vmem:[%s10] sm:$0xf]
  %v1185 = vld [vmem:[%s11] sm:$0x1]
  %v1187 = vlaneseq
  %v1188 = vshrl.u32 %v1187, 7
  %v1189 = vsub.s32 0, %v1188
  %v1190 = vrot.slane %v1185, %v1189
  %vm1192 = vcmask 64512
  %v1194 = vsel %vm1192, %v1183, 0
  %vm1196 = vcmask 1043456
  %v1198 = vsel %vm1196, %v1184, 0
  %1200 = vmatprep.subr.bf16.mxu0 0
  %1201 = vmatpush1.bf16.msra.mxu0 0
  %1202 = vmatprep.subr.bf16.mxu0 0
  %1203 = vmatpush1.bf16.msra.mxu0 0
  %1204 = vmatprep.subr.bf16.mxu0 0
  %1205 = vmatpush1.bf16.msra.mxu0 0
  %1206 = vmatprep.subr.bf16.mxu0 0
  %1207 = vmatpush1.bf16.msra.mxu0 0
  %1208 = vmatprep.subr.bf16.mxu0 0
  %1209 = vmatpush1.bf16.msra.mxu0 0
  %1210 = vmatprep.subr.bf16.mxu0 0
  %1211 = vmatpush1.bf16.msra.mxu0 0
  %1212 = vmatprep.subr.bf16.mxu0 0
  %1213 = vmatpush1.bf16.msra.mxu0 0
  %1214 = vmatprep.subr.bf16.mxu0 0
  %1215 = vmatpush1.bf16.msra.mxu0 %v1198
  %1216 = vmatprep.subr.bf16.mxu0 0
  %1217 = vmatpush2.bf16.msra.mxu0 0
  %1218 = vmatprep.subr.bf16.mxu0 0
  %1219 = vmatpush2.bf16.msra.mxu0 0
  %1220 = vmatprep.subr.bf16.mxu0 0
  %1221 = vmatpush2.bf16.msra.mxu0 0
  %1222 = vmatprep.subr.bf16.mxu0 0
  %1223 = vmatpush2.bf16.msra.mxu0 0
  %1224 = vmatprep.subr.bf16.mxu0 0
  %1225 = vmatpush2.bf16.msra.mxu0 0
  %1226 = vmatprep.subr.bf16.mxu0 0
  %1227 = vmatpush2.bf16.msra.mxu0 0
  %1228 = vmatprep.subr.bf16.mxu0 0
  %1229 = vmatpush2.bf16.msra.mxu0 0
  %1230 = vmatprep.subr.bf16.mxu0 0
  %1231 = vmatpush2.bf16.msra.mxu0 0
  %1232 = vmatprep.mubr.bf16.mxu0 0
  %1233 = vmatmul.mubr.bf16.gmra.mxu0 %v1194
  %v1234 = vpop.f32.mrf.mxu0
  %v1235 = vadd.f32 %v1190, %v1234
  %v1236 = vpop.f32.mrf.mxu0
  %v1237 = vpop.f32.mrf.mxu0
  %v1238 = vpop.f32.mrf.mxu0
  %1239 = vdwg.mxu0
  %v1240 = vmax.f32 %v1235, 0.0
  %v1241 = vpack.c.bf16 %v1240, %v1240
  %v1242 = vld [vmem:[%s12] sm:$0xf]
  %v1243 = vld [vmem:[%s12 + $0x4] sm:$0xf]
  %v1244 = vld [vmem:[%s12 + $0x8] sm:$0xf]
  %v1245 = vld [vmem:[%s12 + $0xc] sm:$0xf]
  %v1246 = vld [vmem:[%s13] sm:$0x1]
  %v1248 = vlaneseq
  %v1249 = vshrl.u32 %v1248, 7
  %v1250 = vsub.s32 0, %v1249
  %v1251 = vrot.slane %v1246, %v1250
  %v1257 = vunpack.c.l.b16 %v1242
  %v1258 = vunpack.c.l.b16 %v1243
  %v1259 = vunpack.c.l.b16 %v1244
  %v1260 = vunpack.c.l.b16 %v1245
  %v1261 = vpack.c.b16 %v1258, %v1257
  %v1262 = vpack.c.b16 %v1260, %v1259
  %v1266 = vsel %vm607, %v1241, 0
  %1268 = vmatprep.subr.bf16.mxu0 0
  %1269 = vmatpush1.bf16.msra.mxu0 0
  %1270 = vmatprep.subr.bf16.mxu0 0
  %1271 = vmatpush1.bf16.msra.mxu0 0
  %1272 = vmatprep.subr.bf16.mxu0 0
  %1273 = vmatpush1.bf16.msra.mxu0 0
  %1274 = vmatprep.subr.bf16.mxu0 0
  %1275 = vmatpush1.bf16.msra.mxu0 0
  %1276 = vmatprep.subr.bf16.mxu0 0
  %1277 = vmatpush1.bf16.msra.mxu0 0
  %1278 = vmatprep.subr.bf16.mxu0 0
  %1279 = vmatpush1.bf16.msra.mxu0 0
  %1280 = vmatprep.subr.bf16.mxu0 0
  %1281 = vmatpush1.bf16.msra.mxu0 %v1262
  %1282 = vmatprep.subr.bf16.mxu0 0
  %1283 = vmatpush1.bf16.msra.mxu0 %v1261
  %1284 = vmatprep.subr.bf16.mxu0 0
  %1285 = vmatpush2.bf16.msra.mxu0 0
  %1286 = vmatprep.subr.bf16.mxu0 0
  %1287 = vmatpush2.bf16.msra.mxu0 0
  %1288 = vmatprep.subr.bf16.mxu0 0
  %1289 = vmatpush2.bf16.msra.mxu0 0
  %1290 = vmatprep.subr.bf16.mxu0 0
  %1291 = vmatpush2.bf16.msra.mxu0 0
  %1292 = vmatprep.subr.bf16.mxu0 0
  %1293 = vmatpush2.bf16.msra.mxu0 0
  %1294 = vmatprep.subr.bf16.mxu0 0
  %1295 = vmatpush2.bf16.msra.mxu0 0
  %1296 = vmatprep.subr.bf16.mxu0 0
  %1297 = vmatpush2.bf16.msra.mxu0 0
  %1298 = vmatprep.subr.bf16.mxu0 0
  %1299 = vmatpush2.bf16.msra.mxu0 0
  %1300 = vmatprep.mubr.bf16.mxu0 0
  %1301 = vmatmul.mubr.bf16.gmra.mxu0 %v1266
  %v1302 = vpop.f32.mrf.mxu0
  %v1303 = vadd.f32 %v1251, %v1302
  %v1304 = vpop.f32.mrf.mxu0
  %v1305 = vpop.f32.mrf.mxu0
  %v1306 = vpop.f32.mrf.mxu0
  %1307 = vdwg.mxu0
  %v1308 = vmax.f32 %v1303, 0.0
  %v1309 = vpack.c.bf16 %v1308, %v1308
  %v1310 = vld [vmem:[%s14] sm:$0xff]
  %v1311 = vld [vmem:[%s14 + $0x8] sm:$0xff]
  %v1312 = vld [vmem:[%s14 + $0x10] sm:$0xff]
  %v1313 = vld [vmem:[%s14 + $0x18] sm:$0xff]
  %v1314 = vld [vmem:[%s14 + $0x20] sm:$0xff]
  %v1315 = vld [vmem:[%s14 + $0x28] sm:$0xff]
  %v1316 = vld [vmem:[%s14 + $0x30] sm:$0xff]
  %v1317 = vld [vmem:[%s14 + $0x38] sm:$0xff]
  %v1318 = vld [vmem:[%s14 + $0x40] sm:$0xff]
  %v1319 = vld [vmem:[%s14 + $0x48] sm:$0xff]
  %v1320 = vld [vmem:[%s14 + $0x50] sm:$0xff]
  %v1321 = vld [vmem:[%s14 + $0x58] sm:$0xff]
  %v1322 = vld [vmem:[%s14 + $0x60] sm:$0xff]
  %v1323 = vld [vmem:[%s14 + $0x68] sm:$0xff]
  %v1324 = vld [vmem:[%s14 + $0x70] sm:$0xff]
  %v1325 = vld [vmem:[%s14 + $0x78] sm:$0xff]
  %v1326 = vld [vmem:[%s14 + $0x80] sm:$0xff]
  %v1327 = vld [vmem:[%s14 + $0x88] sm:$0xff]
  %v1328 = vld [vmem:[%s14 + $0x90] sm:$0xff]
  %v1329 = vld [vmem:[%s14 + $0x98] sm:$0xff]
  %v1330 = vld [vmem:[%s14 + $0xa0] sm:$0xff]
  %v1331 = vld [vmem:[%s14 + $0xa8] sm:$0xff]
  %v1332 = vld [vmem:[%s14 + $0xb0] sm:$0xff]
  %v1333 = vld [vmem:[%s14 + $0xb8] sm:$0xff]
  %v1334 = vld [vmem:[%s14 + $0xc0] sm:$0xff]
  %v1335 = vld [vmem:[%s14 + $0xc8] sm:$0xff]
  %v1336 = vld [vmem:[%s14 + $0xd0] sm:$0xff]
  %v1337 = vld [vmem:[%s14 + $0xd8] sm:$0xff]
  %v1338 = vld [vmem:[%s14 + $0xe0] sm:$0xff]
  %v1339 = vld [vmem:[%s14 + $0xe8] sm:$0xff]
  %v1340 = vld [vmem:[%s14 + $0xf0] sm:$0xff]
  %v1341 = vld [vmem:[%s14 + $0xf8] sm:$0xff]
  %v1342 = vld [vmem:[%s15] sm:$0xff]
  %v1343 = vld [vmem:[%s15 + $0x8] sm:$0xff]
  %v1344 = vld [vmem:[%s15 + $0x10] sm:$0xff]
  %v1345 = vld [vmem:[%s15 + $0x18] sm:$0xff]
  %v1350 = vunpack.c.l.b16 %v1342
  %v1351 = vunpack.c.h.b16 %v1342
  %v1352 = vunpack.c.l.b16 %v1343
  %v1353 = vunpack.c.h.b16 %v1343
  %v1354 = vunpack.c.l.b16 %v1344
  %v1355 = vunpack.c.h.b16 %v1344
  %v1356 = vunpack.c.l.b16 %v1345
  %v1357 = vunpack.c.h.b16 %v1345
  %v1358 = vpack.c.b16 %v1352, %v1350
  %v1359 = vpack.c.b16 %v1353, %v1351
  %v1360 = vpack.c.b16 %v1356, %v1354
  %v1361 = vpack.c.b16 %v1357, %v1355
  %v1367 = vsel %vm607, %v1309, 0
  %1369 = vmatprep.subr.bf16.mxu0 0
  %1370 = vmatpush1.bf16.msra.mxu0 0
  %1371 = vmatprep.subr.bf16.mxu0 0
  %1372 = vmatpush1.bf16.msra.mxu0 0
  %1373 = vmatprep.subr.bf16.mxu0 0
  %1374 = vmatpush1.bf16.msra.mxu0 0
  %1375 = vmatprep.subr.bf16.mxu0 0
  %1376 = vmatpush1.bf16.msra.mxu0 0
  %1377 = vmatprep.subr.bf16.mxu0 0
  %1378 = vmatpush1.bf16.msra.mxu0 0
  %1379 = vmatprep.subr.bf16.mxu0 0
  %1380 = vmatpush1.bf16.msra.mxu0 0
  %1381 = vmatprep.subr.bf16.mxu0 %v1361
  %1382 = vmatpush1.bf16.msra.mxu0 %v1360
  %1383 = vmatprep.subr.bf16.mxu0 %v1359
  %1384 = vmatpush1.bf16.msra.mxu0 %v1358
  %1385 = vmatprep.subr.bf16.mxu0 0
  %1386 = vmatpush2.bf16.msra.mxu0 0
  %1387 = vmatprep.subr.bf16.mxu0 0
  %1388 = vmatpush2.bf16.msra.mxu0 0
  %1389 = vmatprep.subr.bf16.mxu0 0
  %1390 = vmatpush2.bf16.msra.mxu0 0
  %1391 = vmatprep.subr.bf16.mxu0 0
  %1392 = vmatpush2.bf16.msra.mxu0 0
  %1393 = vmatprep.subr.bf16.mxu0 0
  %1394 = vmatpush2.bf16.msra.mxu0 0
  %1395 = vmatprep.subr.bf16.mxu0 0
  %1396 = vmatpush2.bf16.msra.mxu0 0
  %1397 = vmatprep.subr.bf16.mxu0 0
  %1398 = vmatpush2.bf16.msra.mxu0 0
  %1399 = vmatprep.subr.bf16.mxu0 0
  %1400 = vmatpush2.bf16.msra.mxu0 0
  %1401 = vmatprep.mubr.bf16.mxu0 0
  %1402 = vmatmul.mubr.bf16.gmra.mxu0 %v1367
  %v1403 = vpop.f32.mrf.mxu0
  %v1404 = vadd.f32 0.0, %v1403
  %v1405 = vpop.f32.mrf.mxu0
  %v1406 = vadd.f32 0.0, %v1405
  %v1407 = vpop.f32.mrf.mxu0
  %v1408 = vpop.f32.mrf.mxu0
  %1409 = vdwg.mxu0
  %v1442 = vunpack.c.l.b16 %v1310
  %v1443 = vunpack.c.h.b16 %v1310
  %v1444 = vunpack.c.l.b16 %v1311
  %v1445 = vunpack.c.h.b16 %v1311
  %v1446 = vunpack.c.l.b16 %v1312
  %v1447 = vunpack.c.h.b16 %v1312
  %v1448 = vunpack.c.l.b16 %v1313
  %v1449 = vunpack.c.h.b16 %v1313
  %v1450 = vunpack.c.l.b16 %v1314
  %v1451 = vunpack.c.h.b16 %v1314
  %v1452 = vunpack.c.l.b16 %v1315
  %v1453 = vunpack.c.h.b16 %v1315
  %v1454 = vunpack.c.l.b16 %v1316
  %v1455 = vunpack.c.h.b16 %v1316
  %v1456 = vunpack.c.l.b16 %v1317
  %v1457 = vunpack.c.h.b16 %v1317
  %v1458 = vunpack.c.l.b16 %v1318
  %v1459 = vunpack.c.h.b16 %v1318
  %v1460 = vunpack.c.l.b16 %v1319
  %v1461 = vunpack.c.h.b16 %v1319
  %v1462 = vunpack.c.l.b16 %v1320
  %v1463 = vunpack.c.h.b16 %v1320
  %v1464 = vunpack.c.l.b16 %v1321
  %v1465 = vunpack.c.h.b16 %v1321
  %v1466 = vunpack.c.l.b16 %v1322
  %v1467 = vunpack.c.h.b16 %v1322
  %v1468 = vunpack.c.l.b16 %v1323
  %v1469 = vunpack.c.h.b16 %v1323
  %v1470 = vunpack.c.l.b16 %v1324
  %v1471 = vunpack.c.h.b16 %v1324
  %v1472 = vunpack.c.l.b16 %v1325
  %v1473 = vunpack.c.h.b16 %v1325
  %v1474 = vunpack.c.l.b16 %v1326
  %v1475 = vunpack.c.h.b16 %v1326
  %v1476 = vunpack.c.l.b16 %v1327
  %v1477 = vunpack.c.h.b16 %v1327
  %v1478 = vunpack.c.l.b16 %v1328
  %v1479 = vunpack.c.h.b16 %v1328
  %v1480 = vunpack.c.l.b16 %v1329
  %v1481 = vunpack.c.h.b16 %v1329
  %v1482 = vunpack.c.l.b16 %v1330
  %v1483 = vunpack.c.h.b16 %v1330
  %v1484 = vunpack.c.l.b16 %v1331
  %v1485 = vunpack.c.h.b16 %v1331
  %v1486 = vunpack.c.l.b16 %v1332
  %v1487 = vunpack.c.h.b16 %v1332
  %v1488 = vunpack.c.l.b16 %v1333
  %v1489 = vunpack.c.h.b16 %v1333
  %v1490 = vunpack.c.l.b16 %v1334
  %v1491 = vunpack.c.h.b16 %v1334
  %v1492 = vunpack.c.l.b16 %v1335
  %v1493 = vunpack.c.h.b16 %v1335
  %v1494 = vunpack.c.l.b16 %v1336
  %v1495 = vunpack.c.h.b16 %v1336
  %v1496 = vunpack.c.l.b16 %v1337
  %v1497 = vunpack.c.h.b16 %v1337
  %v1498 = vunpack.c.l.b16 %v1338
  %v1499 = vunpack.c.h.b16 %v1338
  %v1500 = vunpack.c.l.b16 %v1339
  %v1501 = vunpack.c.h.b16 %v1339
  %v1502 = vunpack.c.l.b16 %v1340
  %v1503 = vunpack.c.h.b16 %v1340
  %v1504 = vunpack.c.l.b16 %v1341
  %v1505 = vunpack.c.h.b16 %v1341
  %v1506 = vpack.c.b16 %v1444, %v1442
  %v1507 = vpack.c.b16 %v1445, %v1443
  %v1508 = vpack.c.b16 %v1448, %v1446
  %v1509 = vpack.c.b16 %v1449, %v1447
  %v1510 = vpack.c.b16 %v1452, %v1450
  %v1511 = vpack.c.b16 %v1453, %v1451
  %v1512 = vpack.c.b16 %v1456, %v1454
  %v1513 = vpack.c.b16 %v1457, %v1455
  %v1514 = vpack.c.b16 %v1460, %v1458
  %v1515 = vpack.c.b16 %v1461, %v1459
  %v1516 = vpack.c.b16 %v1464, %v1462
  %v1517 = vpack.c.b16 %v1465, %v1463
  %v1518 = vpack.c.b16 %v1468, %v1466
  %v1519 = vpack.c.b16 %v1469, %v1467
  %v1520 = vpack.c.b16 %v1472, %v1470
  %v1521 = vpack.c.b16 %v1473, %v1471
  %v1522 = vpack.c.b16 %v1476, %v1474
  %v1523 = vpack.c.b16 %v1477, %v1475
  %v1524 = vpack.c.b16 %v1480, %v1478
  %v1525 = vpack.c.b16 %v1481, %v1479
  %v1526 = vpack.c.b16 %v1484, %v1482
  %v1527 = vpack.c.b16 %v1485, %v1483
  %v1528 = vpack.c.b16 %v1488, %v1486
  %v1529 = vpack.c.b16 %v1489, %v1487
  %v1530 = vpack.c.b16 %v1492, %v1490
  %v1531 = vpack.c.b16 %v1493, %v1491
  %v1532 = vpack.c.b16 %v1496, %v1494
  %v1533 = vpack.c.b16 %v1497, %v1495
  %v1534 = vpack.c.b16 %v1500, %v1498
  %v1535 = vpack.c.b16 %v1501, %v1499
  %v1536 = vpack.c.b16 %v1504, %v1502
  %v1537 = vpack.c.b16 %v1505, %v1503
  %1570 = vmatprep.subr.bf16.mxu0 %v1521
  %1571 = vmatpush1.bf16.msra.mxu0 %v1520
  %1572 = vmatprep.subr.bf16.mxu0 %v1519
  %1573 = vmatpush1.bf16.msra.mxu0 %v1518
  %1574 = vmatprep.subr.bf16.mxu0 %v1517
  %1575 = vmatpush1.bf16.msra.mxu0 %v1516
  %1576 = vmatprep.subr.bf16.mxu0 %v1515
  %1577 = vmatpush1.bf16.msra.mxu0 %v1514
  %1578 = vmatprep.subr.bf16.mxu0 %v1513
  %1579 = vmatpush1.bf16.msra.mxu0 %v1512
  %1580 = vmatprep.subr.bf16.mxu0 %v1511
  %1581 = vmatpush1.bf16.msra.mxu0 %v1510
  %1582 = vmatprep.subr.bf16.mxu0 %v1509
  %1583 = vmatpush1.bf16.msra.mxu0 %v1508
  %1584 = vmatprep.subr.bf16.mxu0 %v1507
  %1585 = vmatpush1.bf16.msra.mxu0 %v1506
  %1586 = vmatprep.subr.bf16.mxu0 %v1537
  %1587 = vmatpush2.bf16.msra.mxu0 %v1536
  %1588 = vmatprep.subr.bf16.mxu0 %v1535
  %1589 = vmatpush2.bf16.msra.mxu0 %v1534
  %1590 = vmatprep.subr.bf16.mxu0 %v1533
  %1591 = vmatpush2.bf16.msra.mxu0 %v1532
  %1592 = vmatprep.subr.bf16.mxu0 %v1531
  %1593 = vmatpush2.bf16.msra.mxu0 %v1530
  %1594 = vmatprep.subr.bf16.mxu0 %v1529
  %1595 = vmatpush2.bf16.msra.mxu0 %v1528
  %1596 = vmatprep.subr.bf16.mxu0 %v1527
  %1597 = vmatpush2.bf16.msra.mxu0 %v1526
  %1598 = vmatprep.subr.bf16.mxu0 %v1525
  %1599 = vmatpush2.bf16.msra.mxu0 %v1524
  %1600 = vmatprep.subr.bf16.mxu0 %v1523
  %1601 = vmatpush2.bf16.msra.mxu0 %v1522
  %1602 = vmatprep.mubr.bf16.mxu0 %v1182
  %1603 = vmatmul.mubr.bf16.gmra.mxu0 %v1181
  %v1604 = vpop.f32.mrf.mxu0
  %v1605 = vadd.f32 %v1404, %v1604
  %v1606 = vpop.f32.mrf.mxu0
  %v1607 = vadd.f32 %v1406, %v1606
  %v1608 = vpop.f32.mrf.mxu0
  %v1609 = vpop.f32.mrf.mxu0
  %1610 = vdwg.mxu0
  %v1611 = vld [vmem:[%s16] sm:$0x3]
  %v1613 = vlaneseq
  %v1614 = vshrl.u32 %v1613, 7
  %v1615 = vsub.s32 0, %v1614
  %v1616 = vrot.slane %v1611, %v1615
  %v1617 = vlaneseq
  %v1618 = vshrl.u32 %v1617, 7
  %v1619 = vsub.s32 1, %v1618
  %v1620 = vrot.slane %v1611, %v1619
  %v1623 = vadd.f32 %v1605, %v1616
  %v1624 = vadd.f32 %v1607, %v1620
  %v1625 = vmax.f32 %v1623, 0.0
  %v1626 = vmax.f32 %v1624, 0.0
  %v1627 = vpack.c.bf16 %v1625, %v1625
  %v1628 = vpack.c.bf16 %v1626, %v1626
  %v1629 = vld [vmem:[%s17] sm:$0xf]
  %v1630 = vld [vmem:[%s17 + $0x4] sm:$0xf]
  %v1631 = vld [vmem:[%s17 + $0x8] sm:$0xf]
  %v1632 = vld [vmem:[%s17 + $0xc] sm:$0xf]
  %v1633 = vld [vmem:[%s17 + $0x10] sm:$0xf]
  %v1634 = vld [vmem:[%s17 + $0x14] sm:$0xf]
  %v1635 = vld [vmem:[%s17 + $0x18] sm:$0xf]
  %v1636 = vld [vmem:[%s17 + $0x1c] sm:$0xf]
  %v1637 = vld [vmem:[%s17 + $0x20] sm:$0xf]
  %v1638 = vld [vmem:[%s17 + $0x24] sm:$0xf]
  %v1639 = vld [vmem:[%s17 + $0x28] sm:$0xf]
  %v1640 = vld [vmem:[%s17 + $0x2c] sm:$0xf]
  %v1641 = vld [vmem:[%s17 + $0x30] sm:$0xf]
  %v1642 = vld [vmem:[%s17 + $0x34] sm:$0xf]
  %v1643 = vld [vmem:[%s17 + $0x38] sm:$0xf]
  %v1644 = vld [vmem:[%s17 + $0x3c] sm:$0xf]
  %v1645 = vld [vmem:[%s17 + $0x40] sm:$0xf]
  %v1646 = vld [vmem:[%s17 + $0x44] sm:$0xf]
  %v1647 = vld [vmem:[%s17 + $0x48] sm:$0xf]
  %v1648 = vld [vmem:[%s17 + $0x4c] sm:$0xf]
  %v1649 = vld [vmem:[%s17 + $0x50] sm:$0xf]
  %v1650 = vld [vmem:[%s17 + $0x54] sm:$0xf]
  %v1651 = vld [vmem:[%s17 + $0x58] sm:$0xf]
  %v1652 = vld [vmem:[%s17 + $0x5c] sm:$0xf]
  %v1653 = vld [vmem:[%s17 + $0x60] sm:$0xf]
  %v1654 = vld [vmem:[%s17 + $0x64] sm:$0xf]
  %v1655 = vld [vmem:[%s17 + $0x68] sm:$0xf]
  %v1656 = vld [vmem:[%s17 + $0x6c] sm:$0xf]
  %v1657 = vld [vmem:[%s17 + $0x70] sm:$0xf]
  %v1658 = vld [vmem:[%s17 + $0x74] sm:$0xf]
  %v1659 = vld [vmem:[%s17 + $0x78] sm:$0xf]
  %v1660 = vld [vmem:[%s17 + $0x7c] sm:$0xf]
  %v1661 = vld [vmem:[%s18] sm:$0x1]
  %v1663 = vlaneseq
  %v1664 = vshrl.u32 %v1663, 7
  %v1665 = vsub.s32 0, %v1664
  %v1666 = vrot.slane %v1661, %v1665
  %v1700 = vunpack.c.l.b16 %v1629
  %v1701 = vunpack.c.l.b16 %v1630
  %v1702 = vunpack.c.l.b16 %v1631
  %v1703 = vunpack.c.l.b16 %v1632
  %v1704 = vunpack.c.l.b16 %v1633
  %v1705 = vunpack.c.l.b16 %v1634
  %v1706 = vunpack.c.l.b16 %v1635
  %v1707 = vunpack.c.l.b16 %v1636
  %v1708 = vunpack.c.l.b16 %v1637
  %v1709 = vunpack.c.l.b16 %v1638
  %v1710 = vunpack.c.l.b16 %v1639
  %v1711 = vunpack.c.l.b16 %v1640
  %v1712 = vunpack.c.l.b16 %v1641
  %v1713 = vunpack.c.l.b16 %v1642
  %v1714 = vunpack.c.l.b16 %v1643
  %v1715 = vunpack.c.l.b16 %v1644
  %v1716 = vunpack.c.l.b16 %v1645
  %v1717 = vunpack.c.l.b16 %v1646
  %v1718 = vunpack.c.l.b16 %v1647
  %v1719 = vunpack.c.l.b16 %v1648
  %v1720 = vunpack.c.l.b16 %v1649
  %v1721 = vunpack.c.l.b16 %v1650
  %v1722 = vunpack.c.l.b16 %v1651
  %v1723 = vunpack.c.l.b16 %v1652
  %v1724 = vunpack.c.l.b16 %v1653
  %v1725 = vunpack.c.l.b16 %v1654
  %v1726 = vunpack.c.l.b16 %v1655
  %v1727 = vunpack.c.l.b16 %v1656
  %v1728 = vunpack.c.l.b16 %v1657
  %v1729 = vunpack.c.l.b16 %v1658
  %v1730 = vunpack.c.l.b16 %v1659
  %v1731 = vunpack.c.l.b16 %v1660
  %v1732 = vpack.c.b16 %v1701, %v1700
  %v1733 = vpack.c.b16 %v1703, %v1702
  %v1734 = vpack.c.b16 %v1705, %v1704
  %v1735 = vpack.c.b16 %v1707, %v1706
  %v1736 = vpack.c.b16 %v1709, %v1708
  %v1737 = vpack.c.b16 %v1711, %v1710
  %v1738 = vpack.c.b16 %v1713, %v1712
  %v1739 = vpack.c.b16 %v1715, %v1714
  %v1740 = vpack.c.b16 %v1717, %v1716
  %v1741 = vpack.c.b16 %v1719, %v1718
  %v1742 = vpack.c.b16 %v1721, %v1720
  %v1743 = vpack.c.b16 %v1723, %v1722
  %v1744 = vpack.c.b16 %v1725, %v1724
  %v1745 = vpack.c.b16 %v1727, %v1726
  %v1746 = vpack.c.b16 %v1729, %v1728
  %v1747 = vpack.c.b16 %v1731, %v1730
  %1764 = vmatprep.subr.bf16.mxu0 0
  %1765 = vmatpush1.bf16.msra.mxu0 %v1739
  %1766 = vmatprep.subr.bf16.mxu0 0
  %1767 = vmatpush1.bf16.msra.mxu0 %v1738
  %1768 = vmatprep.subr.bf16.mxu0 0
  %1769 = vmatpush1.bf16.msra.mxu0 %v1737
  %1770 = vmatprep.subr.bf16.mxu0 0
  %1771 = vmatpush1.bf16.msra.mxu0 %v1736
  %1772 = vmatprep.subr.bf16.mxu0 0
  %1773 = vmatpush1.bf16.msra.mxu0 %v1735
  %1774 = vmatprep.subr.bf16.mxu0 0
  %1775 = vmatpush1.bf16.msra.mxu0 %v1734
  %1776 = vmatprep.subr.bf16.mxu0 0
  %1777 = vmatpush1.bf16.msra.mxu0 %v1733
  %1778 = vmatprep.subr.bf16.mxu0 0
  %1779 = vmatpush1.bf16.msra.mxu0 %v1732
  %1780 = vmatprep.subr.bf16.mxu0 0
  %1781 = vmatpush2.bf16.msra.mxu0 %v1747
  %1782 = vmatprep.subr.bf16.mxu0 0
  %1783 = vmatpush2.bf16.msra.mxu0 %v1746
  %1784 = vmatprep.subr.bf16.mxu0 0
  %1785 = vmatpush2.bf16.msra.mxu0 %v1745
  %1786 = vmatprep.subr.bf16.mxu0 0
  %1787 = vmatpush2.bf16.msra.mxu0 %v1744
  %1788 = vmatprep.subr.bf16.mxu0 0
  %1789 = vmatpush2.bf16.msra.mxu0 %v1743
  %1790 = vmatprep.subr.bf16.mxu0 0
  %1791 = vmatpush2.bf16.msra.mxu0 %v1742
  %1792 = vmatprep.subr.bf16.mxu0 0
  %1793 = vmatpush2.bf16.msra.mxu0 %v1741
  %1794 = vmatprep.subr.bf16.mxu0 0
  %1795 = vmatpush2.bf16.msra.mxu0 %v1740
  %1796 = vmatprep.mubr.bf16.mxu0 %v1628
  %1797 = vmatmul.mubr.bf16.gmra.mxu0 %v1627
  %v1798 = vpop.f32.mrf.mxu0
  %v1799 = vadd.f32 %v1666, %v1798
  %v1800 = vpop.f32.mrf.mxu0
  %v1801 = vpop.f32.mrf.mxu0
  %v1802 = vpop.f32.mrf.mxu0
  %1803 = vdwg.mxu0
  %v1804 = vlaneseq
  %v1805 = vand.u32 %v1804, 127
  %vm1806 = vcmp.lt.s32.totalorder %v1805, 10
  %v1807 = vsel %vm1806, %v1799, -1e+30
  %1808 = vmax.xlane.f32.xlu0 %v1807
  %v1809 = vpop.xlane.xlu0 %1808
  %v1810 = vsub.f32 %v1799, %v1809
  %v1811 = vmul.f32 %v1810, 1.442695
  %v1812 = vpow.pop %v1811
  %v1813 = vsel %vm1806, %v1812, 0.0
  %1814 = vadd.xlane.f32.xlu0 %v1813
  %v1815 = vpop.xlane.xlu0 %1814
  %v1816 = vlog2.pop %v1815
  %v1817 = vmul.f32 %v1816, 0.6931472
  %v1818 = vadd.f32 %v1817, %v1809
  %v1819 = vsub.f32 %v1799, %v1818
  %vm1820 = vcmp.eq.s32.totalorder %v1805, 10
  %v1821 = vtanh.pop %v1799
  %v1822 = vsel %vm1820, %v1821, 0.0
  %v1823 = vsel %vm1806, %v1819, %v1822
  %1824 = vst [vmem:[%s19] sm:$0xff] %v1823
  // Predicated region
  $region78: #{nnet_pallas_forward.1} parent=0 // pred_check
    _
  $region79: #{nnet_pallas_forward.1} parent=0 // pred_check_branch
    %1826 = sbr.rel (0) target = $region81
  $region80: #{nnet_pallas_forward.1} parent=0 // pred_region
    _
  $region81: #{nnet_pallas_forward.1} parent=0 // pred_fallthru
    _
  // Predicated region
  $region82: #{nnet_pallas_forward.1} parent=0 // pred_check
    _
  $region83: #{nnet_pallas_forward.1} parent=0 // pred_check_branch
    %1828 = sbr.rel (0) target = $region85
  $region84: #{nnet_pallas_forward.1} parent=0 // pred_region
    _
  $region85: #{nnet_pallas_forward.1} parent=0 // pred_fallthru
    _

</llo_original>
